<compile_context>
chip_gen: v5e
topology: v5e:2x2
jax: 0.10.0
libtpu: 0.0.40
codegen_flags: <defaults>
</compile_context>

<pallas_src>
import functools

import jax
import jax.numpy as jnp
from jax.experimental import pallas as pl
from jax.experimental.pallas import tpu as pltpu

VGG19_CFG = [64, 64, 'M', 128, 128, 'M', 256, 256, 256, 256, 'M',
             512, 512, 512, 512, 'M', 512, 512, 512, 512, 'M']


def _round_up(x, m):
    return ((x + m - 1) // m) * m


def _default_vmem_limit():
    # Generation-adaptive scoped-VMEM limit: ~3/4 of physical VMEM (96 MiB on
    # v5e/v6e's 128 MiB, 48 MiB on v7x's 64 MiB); conservative 32 MiB fallback.
    try:
        info = pltpu.get_tpu_info()
        cap = getattr(info, "vmem_capacity_bytes", None)
        if cap:
            return max(32 * 1024 * 1024,
                       min(int(cap) * 3 // 4, 96 * 1024 * 1024))
    except Exception:
        pass
    return 32 * 1024 * 1024


_VMEM_LIMIT = 32 * 1024 * 1024
_VMEM_LIMIT = _default_vmem_limit()


# ----------------------------------------------------------------------------
# 3x3 conv (stride 1, pad 1) + bias + ReLU for Cin >= 64.
#
# The wrapper zero-pads the image to (H+2, Wq, Cin) where Wq = roundup(W+2, 8)
# and flattens it per batch element to ((H+2)*Wq, Cin) so every stencil tap is
# a constant flat-row offset.  The grid tiles *output* rows (th per tile); the
# (th+2)*Wq input rows each tile needs (a 2-row halo) are streamed from HBM
# with a manual double-buffered DMA (memory_space=pl.ANY).  Outputs are written
# directly into the final (N, H, W, Cout) activation -- no wrapper-side slice /
# reshape round trip.  Grid = (batch, row_tiles): batch "parallel" (megacore),
# row tiles "arbitrary" (sequential prefetch chain per image).
# ----------------------------------------------------------------------------
def _conv3x3_kernel(x_hbm, w_ref, b_ref, o_ref, xbuf, sem,
                    *, wq, th, w_out, rows_fetch):
    b = pl.program_id(0)
    t = pl.program_id(1)
    nt = pl.num_programs(1)
    slot = t % 2

    def copy_for(ti, sl):
        # One descriptor builder used for BOTH start and wait so the slice /
        # size always match (review correctness concern).
        return pltpu.make_async_copy(
            x_hbm.at[b, pl.ds(ti * th * wq, rows_fetch), :],
            xbuf.at[sl, pl.ds(0, rows_fetch), :],
            sem.at[sl])

    @pl.when(t == 0)
    def _():
        copy_for(0, slot).start()            # prime this image's first tile

    @pl.when(t + 1 < nt)
    def _():
        copy_for(t + 1, 1 - slot).start()    # prefetch next row tile

    copy_for(t, slot).wait()                 # identical descriptor to start

    p = th * wq
    cout = o_ref.shape[-1]
    acc = jnp.zeros((p, cout), jnp.float32)
    # TODO(synk): dx-tap fusion (3 matmuls of K=3*Cin) would raise MXU depth
    # utilisation for the 64/128-channel layers; kept as 9 K=Cin taps for
    # lowering safety.
    for dy in range(3):
        for dx in range(3):
            off = dy * wq + dx
            patch = xbuf[slot, pl.ds(off, p), :]           # (p, Cin) bf16
            acc = acc + jnp.dot(patch, w_ref[dy, dx],
                                preferred_element_type=jnp.float32)
    out = jnp.maximum(acc + b_ref[...], 0.0)               # bias + ReLU in f32
    # (p, Cout) -> (th, Wq, Cout): split of the leading dim at an 8-aligned
    # boundary (Wq % 8 == 0), then drop the never-valid pad columns.
    out = out.reshape(th, wq, cout)[:, :w_out, :]
    o_ref[...] = out.astype(o_ref.dtype)


def _pick_conv_rows(h, wq, cin, cout):
    # Target flat-row tile size by channel width (bigger tiles for the cheap,
    # overhead-dominated 64/128-channel layers; ~1 MB f32 accumulator max).
    c = max(cin, cout)
    if c <= 64:
        target = 4096
    elif c <= 128:
        target = 2048
    elif c <= 256:
        target = 1024
    else:
        target = 512
    cap = max(1, target // wq)
    th = 1
    for d in range(1, h + 1):
        if h % d == 0 and d <= cap:
            th = d
    return th


def conv3x3_relu(x, w, b):
    n, h, wdim, cin = x.shape
    cout = w.shape[-1]
    wq = _round_up(wdim + 2, 8)          # padded row width, 8-aligned
    # Single pad copy: 1 zero row top/bottom, 1 zero col left, (wq-wdim-1)
    # zero cols right (only col wdim+1 is ever read as pad; extras are inert).
    xp = jnp.pad(x, ((0, 0), (1, 1), (1, wq - wdim - 1), (0, 0)))
    xflat = xp.reshape(n, (h + 2) * wq, cin)

    th = _pick_conv_rows(h, wq, cin, cout)
    rows_fetch = (th + 2) * wq
    rows_alloc = rows_fetch + 16         # slack rows for garbage-column taps

    kernel = functools.partial(_conv3x3_kernel, wq=wq, th=th, w_out=wdim,
                               rows_fetch=rows_fetch)
    return pl.pallas_call(
        kernel,
        out_shape=jax.ShapeDtypeStruct((n, h, wdim, cout), jnp.bfloat16),
        grid=(n, h // th),
        in_specs=[pl.BlockSpec(memory_space=pl.ANY),       # raw HBM, manual DMA
                  pl.BlockSpec((3, 3, cin, cout), lambda bi, ti: (0, 0, 0, 0)),
                  pl.BlockSpec((1, cout), lambda bi, ti: (0, 0))],
        out_specs=pl.BlockSpec((None, th, wdim, cout),
                               lambda bi, ti: (bi, ti, 0, 0)),
        scratch_shapes=[pltpu.VMEM((2, rows_alloc, cin), jnp.bfloat16),
                        pltpu.SemaphoreType.DMA((2,))],
        compiler_params=pltpu.CompilerParams(
            dimension_semantics=("parallel", "arbitrary"),
            vmem_limit_bytes=_VMEM_LIMIT),
    )(xflat, w, b)


# ----------------------------------------------------------------------------
# First conv layer (Cin=3): im2col to K=27 so the MXU contraction dim is not
# starved; a plain row-tiled matmul + bias + ReLU with large (8192-row) tiles.
# ----------------------------------------------------------------------------
def _matmul_bias_relu_kernel(x_ref, w_ref, b_ref, o_ref):
    acc = jnp.dot(x_ref[...], w_ref[...], preferred_element_type=jnp.float32)
    o_ref[...] = jnp.maximum(acc + b_ref[...], 0.0).astype(o_ref.dtype)


def conv3x3_relu_im2col(x, w, b):
    n, h, wdim, cin = x.shape
    cout = w.shape[-1]
    xp = jnp.pad(x, ((0, 0), (1, 1), (1, 1), (0, 0)))
    cols = [xp[:, dy:dy + h, dx:dx + wdim, :]
            for dy in range(3) for dx in range(3)]
    kdim = 9 * cin
    xcol = jnp.concatenate(cols, axis=-1).reshape(n * h * wdim, kdim)
    wcol = w.reshape(kdim, cout)

    p = n * h * wdim
    tp = 8192 if p >= 8192 else _round_up(p, 16)
    p_pad = _round_up(p, tp)
    if p_pad > p:
        xcol = jnp.pad(xcol, ((0, p_pad - p), (0, 0)))

    y = pl.pallas_call(
        _matmul_bias_relu_kernel,
        out_shape=jax.ShapeDtypeStruct((p_pad, cout), jnp.bfloat16),
        grid=(p_pad // tp,),
        in_specs=[pl.BlockSpec((tp, kdim), lambda i: (i, 0)),
                  pl.BlockSpec((kdim, cout), lambda i: (0, 0)),
                  pl.BlockSpec((1, cout), lambda i: (0, 0))],
        out_specs=pl.BlockSpec((tp, cout), lambda i: (i, 0)),
        compiler_params=pltpu.CompilerParams(
            dimension_semantics=("parallel",),
            vmem_limit_bytes=_VMEM_LIMIT),
    )(xcol, wcol, b)
    return y[:p].reshape(n, h, wdim, cout)


# ----------------------------------------------------------------------------
# MaxPool2d((2,2), (2,2)): stride-2 slices (no reshape across the (8,128)
# tile), tiled over (batch, output-row tiles), both axes "parallel".
# ----------------------------------------------------------------------------
def _maxpool2x2_kernel(x_ref, o_ref):
    wo = o_ref.shape[1]
    ev = x_ref[:, pl.ds(0, wo, stride=2), :]     # even W columns (2*th, wo, c)
    od = x_ref[:, pl.ds(1, wo, stride=2), :]     # odd  W columns
    m = jnp.maximum(ev, od)
    o_ref[...] = jnp.maximum(m[0::2], m[1::2])   # even/odd H rows


def maxpool2x2(x):
    n, h, w, c = x.shape
    assert h % 2 == 0 and w % 2 == 0, "MaxPool2d((2,2),(2,2)) expects even H/W"
    ho, wo = h // 2, w // 2
    th = min(ho, 64)
    while ho % th:
        th -= 1
    return pl.pallas_call(
        _maxpool2x2_kernel,
        out_shape=jax.ShapeDtypeStruct((n, ho, wo, c), x.dtype),
        grid=(n, ho // th),
        in_specs=[pl.BlockSpec((None, 2 * th, w, c),
                               lambda bi, i: (bi, i, 0, 0))],
        out_specs=pl.BlockSpec((None, th, wo, c),
                               lambda bi, i: (bi, i, 0, 0)),
        compiler_params=pltpu.CompilerParams(
            dimension_semantics=("parallel", "parallel"),
            vmem_limit_bytes=_VMEM_LIMIT),
    )(x)


# ----------------------------------------------------------------------------
# Linear (+ bias, optional ReLU): K-tiled matmul, f32 accumulator, bf16 weight
# streaming with 3-deep buffering and large weight blocks (tk up to 3584,
# tn up to 1024) so the per-step DMA dwarfs the fixed pipeline step cost.
# ----------------------------------------------------------------------------
def _linear_kernel(x_ref, w_ref, b_ref, o_ref, acc_ref, *, relu):
    k = pl.program_id(1)

    @pl.when(k == 0)
    def _():
        acc_ref[...] = jnp.zeros_like(acc_ref)

    acc_ref[...] += jnp.dot(x_ref[...], w_ref[...],
                            preferred_element_type=jnp.float32)

    @pl.when(k == pl.num_programs(1) - 1)
    def _():
        r = acc_ref[...] + b_ref[...]
        if relu:
            r = jnp.maximum(r, 0.0)
        o_ref[...] = r.astype(o_ref.dtype)


def _pick_tile(dim, candidates):
    for c in candidates:
        if dim % c == 0:
            return c
    return dim


def linear(x, w, b, relu):
    m, kdim = x.shape
    nout = w.shape[1]
    tk = _pick_tile(kdim, (3584, 2048, 1024, 512))   # 3584 divides 25088
    tn = _pick_tile(nout, (1024, 512))
    kernel = functools.partial(_linear_kernel, relu=relu)
    return pl.pallas_call(
        kernel,
        out_shape=jax.ShapeDtypeStruct((m, nout), jnp.float32),
        grid=(nout // tn, kdim // tk),
        in_specs=[pl.BlockSpec((m, tk), lambda j, k: (0, k)),
                  pl.BlockSpec((tk, tn), lambda j, k: (k, j),
                               pipeline_mode=pl.Buffered(3)),
                  pl.BlockSpec((1, tn), lambda j, k: (0, j))],
        out_specs=pl.BlockSpec((m, tn), lambda j, k: (0, j)),
        scratch_shapes=[pltpu.VMEM((m, tn), jnp.float32)],
        compiler_params=pltpu.CompilerParams(
            dimension_semantics=("parallel", "arbitrary"),
            vmem_limit_bytes=_VMEM_LIMIT),
    )(x, w, b.reshape(1, nout))


# ----------------------------------------------------------------------------
# AdaptiveAvgPool2d((7,7)) — exact PyTorch floor/ceil window semantics.
# TODO(synk): tiny op (<= 7x7x512 per image); kept as plain JAX glue.
# ----------------------------------------------------------------------------
def adaptive_avg_pool_nhwc(x, out_h, out_w):
    n, h, w, c = x.shape
    rows = []
    for i in range(out_h):
        hs = (i * h) // out_h
        he = -((-(i + 1) * h) // out_h)
        cols = []
        for j in range(out_w):
            ws = (j * w) // out_w
            we = -((-(j + 1) * w) // out_w)
            cols.append(jnp.mean(x[:, hs:he, ws:we, :], axis=(1, 2)))
        rows.append(jnp.stack(cols, axis=1))
    return jnp.stack(rows, axis=1)  # (n, out_h, out_w, c)


# ----------------------------------------------------------------------------
# Parameter init (matches the module's init schemes; weights stored in bf16)
# ----------------------------------------------------------------------------
def init_params(key, num_classes=1000):
    params = {"features": [], "classifier": []}
    in_c = 3
    for v in VGG19_CFG:
        if v == 'M':
            params["features"].append(('M', None, None))
        else:
            key, kw = jax.random.split(key)
            fan_out = v * 3 * 3                       # kaiming_normal_, fan_out
            std = (2.0 / fan_out) ** 0.5
            w = (std * jax.random.normal(kw, (3, 3, in_c, v), jnp.float32)
                 ).astype(jnp.bfloat16)
            b = jnp.zeros((1, v), jnp.float32)        # bias init 0 (kept f32)
            params["features"].append(('C', w, b))
            in_c = v
    for din, dout in [(512 * 7 * 7, 4096), (4096, 4096), (4096, num_classes)]:
        key, kw = jax.random.split(key)
        w = (0.01 * jax.random.normal(kw, (din, dout), jnp.float32)
             ).astype(jnp.bfloat16)                   # normal(0, 0.01)
        b = jnp.zeros((dout,), jnp.float32)
        params["classifier"].append((w, b))
    return params


# ----------------------------------------------------------------------------
# Full forward, mirroring _FeatureExtractor._forward_impl
# ----------------------------------------------------------------------------
def feature_extractor_forward(x_nchw, params):
    x = jnp.transpose(x_nchw, (0, 2, 3, 1)).astype(jnp.bfloat16)   # NCHW->NHWC
    for kind, w, b in params["features"]:
        if kind == 'M':
            x = maxpool2x2(x)
        elif x.shape[-1] < 16:                 # first conv layer (Cin == 3)
            x = conv3x3_relu_im2col(x, w, b)
        else:
            x = conv3x3_relu(x, w, b)
    x = adaptive_avg_pool_nhwc(x.astype(jnp.float32), 7, 7)   # (N, 7, 7, 512)
    n = x.shape[0]
    x = jnp.transpose(x, (0, 3, 1, 2)).reshape(n, -1)         # torch.flatten
    (w1, b1), (w2, b2), (w3, b3) = params["classifier"]
    x = linear(x.astype(jnp.bfloat16), w1, b1, relu=True)
    # TODO(synk): Dropout(0.5) is stochastic in training; identity in eval mode.
    x = linear(x.astype(jnp.bfloat16), w2, b2, relu=True)
    x = linear(x.astype(jnp.bfloat16), w3, b3, relu=False)
    return x


if __name__ == "__main__":
    key = jax.random.PRNGKey(0)
    kp, kx = jax.random.split(key)
    params = init_params(kp, num_classes=1000)
    # small input consistent with the module: NCHW, 3 channels (required),
    # spatial divisible by 2^5 so the five maxpools stay even.
    x = jax.random.normal(kx, (2, 3, 32, 32), jnp.float32)
    out = feature_extractor_forward(x, params)
    out = jax.block_until_ready(out)
    assert out.shape == (2, 1000) and out.dtype == jnp.float32
    print("KERNEL_OK")
</pallas_src>

<mosaic_0001>
module attributes {stable_mosaic.version = 11 : i64} {
  func.func @_matmul_bias_relu_kernel(%arg0: i32, %arg1: memref<2048x27xbf16, #tpu.memory_space<vmem>>, %arg2: memref<27x64xbf16, #tpu.memory_space<vmem>>, %arg3: memref<1x64xf32, #tpu.memory_space<vmem>>, %arg4: memref<2048x64xbf16, #tpu.memory_space<vmem>>) attributes {dimension_semantics = [#tpu.dimension_semantics<parallel>], iteration_bounds = array<i64: 1>, scalar_prefetch = 0 : i64, scratch_operands = 0 : i64, tpu.core_type = #tpu.core_type<tc>, window_params = [{transform_indices = @transform_0, window_bounds = array<i64: 2048, 27>}, {pipeline_mode = #tpu.pipeline_mode<synchronous>, transform_indices = @transform_1, window_bounds = array<i64: 27, 64>}, {pipeline_mode = #tpu.pipeline_mode<synchronous>, transform_indices = @transform_2, window_bounds = array<i64: 1, 64>}, {transform_indices = @transform_3, window_bounds = array<i64: 2048, 64>}]} {
    %c0 = arith.constant 0 : index
    %c0_0 = arith.constant 0 : index
    %0 = vector.load %arg1[%c0, %c0_0] : memref<2048x27xbf16, #tpu.memory_space<vmem>>, vector<2048x27xbf16>
    %c0_1 = arith.constant 0 : index
    %c0_2 = arith.constant 0 : index
    %1 = vector.load %arg2[%c0_1, %c0_2] : memref<27x64xbf16, #tpu.memory_space<vmem>>, vector<27x64xbf16>
    %cst = arith.constant dense<0.000000e+00> : vector<2048x64xf32>
    %2 = tpu.matmul %0, %1, %cst {dimension_numbers = #tpu.dot_dimension_numbers<[1], [0], [0], [1], [0, 0, 1, 1], [], []>} : vector<2048x27xbf16>, vector<27x64xbf16>, vector<2048x64xf32> -> vector<2048x64xf32>
    %c0_3 = arith.constant 0 : index
    %c0_4 = arith.constant 0 : index
    %3 = vector.load %arg3[%c0_3, %c0_4] : memref<1x64xf32, #tpu.memory_space<vmem>>, vector<1x64xf32>
    %4 = vector.broadcast %3 : vector<1x64xf32> to vector<2048x64xf32>
    %5 = arith.addf %2, %4 : vector<2048x64xf32>
    %cst_5 = arith.constant 0.000000e+00 : f32
    %6 = vector.broadcast %cst_5 : f32 to vector<2048x64xf32>
    %7 = arith.maximumf %5, %6 : vector<2048x64xf32>
    %8 = arith.truncf %7 : vector<2048x64xf32> to vector<2048x64xbf16>
    %c0_6 = arith.constant 0 : index
    %c0_7 = arith.constant 0 : index
    %9 = vector.load %arg4[%c0_6, %c0_7] : memref<2048x64xbf16, #tpu.memory_space<vmem>>, vector<2048x64xbf16>
    tpu.vector_store %arg4[%c0_6, %c0_7], %8 {strides = array<i32>} : memref<2048x64xbf16, #tpu.memory_space<vmem>>, vector<2048x64xbf16>,
    return
  }
  func.func @transform_0(%arg0: i32) -> (i32, i32) {
    %c0_i32 = arith.constant 0 : i32
    %c0_i32_0 = arith.constant 0 : i32
    return %arg0, %c0_i32 : i32, i32
  }
  func.func @transform_1(%arg0: i32) -> (i32, i32) {
    %c0_i32 = arith.constant 0 : i32
    %c0_i32_0 = arith.constant 0 : i32
    %c0_i32_1 = arith.constant 0 : i32
    return %c0_i32, %c0_i32_0 : i32, i32
  }
  func.func @transform_2(%arg0: i32) -> (i32, i32) {
    %c0_i32 = arith.constant 0 : i32
    %c0_i32_0 = arith.constant 0 : i32
    %c0_i32_1 = arith.constant 0 : i32
    return %c0_i32, %c0_i32_0 : i32, i32
  }
  func.func @transform_3(%arg0: i32) -> (i32, i32) {
    %c0_i32 = arith.constant 0 : i32
    %c0_i32_0 = arith.constant 0 : i32
    return %arg0, %c0_i32 : i32, i32
  }
}

</mosaic_0001>

<llo_original>
// kernel: tpu_custom_call.1
$region0: #{tpu_custom_call.1}
  #allocation0 [shape = 'u32[]', space=smem, size = 0x4, offset = 0x4, fixed_abs, tag = 'smem constant byte address 0x4 - core index']
  #allocation1 [shape = 'u32[72,128]{1,0:T(1,128)}', space=vmem, size = 0x9000, scoped, tag = 'internal scratch']
  %s0 = inlined_call_operand.vmem [shape: bf16[2048,27], index: 0, kind: input, shape index: {}]
  %s1 = inlined_call_operand.vmem [shape: bf16[27,64], index: 1, kind: input, shape index: {}]
  %s2 = inlined_call_operand.vmem [shape: f32[1,64], index: 2, kind: input, shape index: {}]
  %s3 = inlined_call_operand.vmem [shape: bf16[2048,64], index: 3, kind: output, shape index: {}]
  %s4 = sld [smem:[#allocation0]]
  $region22: #{tpu_custom_call.1} parent=0
    _
  %s6 = ssub.s32 1, %s4
  %s7 = scalar_select 0, %s6, %s4
  // Predicated region
  $region2: #{tpu_custom_call.1} parent=0 // pred_check
    _
  $region3: #{tpu_custom_call.1} parent=0 // pred_check_branch
    %9 = sbr.rel (0) target = $region5
  $region4: #{tpu_custom_call.1} parent=0 // pred_region
    _
  $region5: #{tpu_custom_call.1} parent=0 // pred_fallthru
    _
  // Predicated region
  $region6: #{tpu_custom_call.1} parent=0 // pred_check
    _
  $region7: #{tpu_custom_call.1} parent=0 // pred_check_branch
    %11 = sbr.rel (0) target = $region9
  $region8: #{tpu_custom_call.1} parent=0 // pred_region
    _
  $region9: #{tpu_custom_call.1} parent=0 // pred_fallthru
    _
  // Predicated region
  $region10: #{tpu_custom_call.1} parent=0 // pred_check
    _
  $region11: #{tpu_custom_call.1} parent=0 // pred_check_branch
    %13 = sbr.rel (0) target = $region13
  $region12: #{tpu_custom_call.1} parent=0 // pred_region
    _
  $region13: #{tpu_custom_call.1} parent=0 // pred_fallthru
    _
  %v15 = vld [vmem:[%s0] sm:$0xf]
  %v16 = vld [vmem:[%s0 + $0x4] sm:$0xf]
  %v17 = vld [vmem:[%s0 + $0x8] sm:$0xf]
  %v18 = vld [vmem:[%s0 + $0xc] sm:$0xf]
  %v19 = vld [vmem:[%s0 + $0x10] sm:$0xf]
  %v20 = vld [vmem:[%s0 + $0x14] sm:$0xf]
  %v21 = vld [vmem:[%s0 + $0x18] sm:$0xf]
  %v22 = vld [vmem:[%s0 + $0x1c] sm:$0xf]
  %v23 = vld [vmem:[%s0 + $0x20] sm:$0xf]
  %v24 = vld [vmem:[%s0 + $0x24] sm:$0xf]
  %v25 = vld [vmem:[%s0 + $0x28] sm:$0xf]
  %v26 = vld [vmem:[%s0 + $0x2c] sm:$0xf]
  %v27 = vld [vmem:[%s0 + $0x30] sm:$0xf]
  %v28 = vld [vmem:[%s0 + $0x34] sm:$0xf]
  %v29 = vld [vmem:[%s0 + $0x38] sm:$0xf]
  %v30 = vld [vmem:[%s0 + $0x3c] sm:$0xf]
  %v31 = vld [vmem:[%s0 + $0x40] sm:$0xf]
  %v32 = vld [vmem:[%s0 + $0x44] sm:$0xf]
  %v33 = vld [vmem:[%s0 + $0x48] sm:$0xf]
  %v34 = vld [vmem:[%s0 + $0x4c] sm:$0xf]
  %v35 = vld [vmem:[%s0 + $0x50] sm:$0xf]
  %v36 = vld [vmem:[%s0 + $0x54] sm:$0xf]
  %v37 = vld [vmem:[%s0 + $0x58] sm:$0xf]
  %v38 = vld [vmem:[%s0 + $0x5c] sm:$0xf]
  %v39 = vld [vmem:[%s0 + $0x60] sm:$0xf]
  %v40 = vld [vmem:[%s0 + $0x64] sm:$0xf]
  %v41 = vld [vmem:[%s0 + $0x68] sm:$0xf]
  %v42 = vld [vmem:[%s0 + $0x6c] sm:$0xf]
  %v43 = vld [vmem:[%s0 + $0x70] sm:$0xf]
  %v44 = vld [vmem:[%s0 + $0x74] sm:$0xf]
  %v45 = vld [vmem:[%s0 + $0x78] sm:$0xf]
  %v46 = vld [vmem:[%s0 + $0x7c] sm:$0xf]
  %v47 = vld [vmem:[%s0 + $0x80] sm:$0xf]
  %v48 = vld [vmem:[%s0 + $0x84] sm:$0xf]
  %v49 = vld [vmem:[%s0 + $0x88] sm:$0xf]
  %v50 = vld [vmem:[%s0 + $0x8c] sm:$0xf]
  %v51 = vld [vmem:[%s0 + $0x90] sm:$0xf]
  %v52 = vld [vmem:[%s0 + $0x94] sm:$0xf]
  %v53 = vld [vmem:[%s0 + $0x98] sm:$0xf]
  %v54 = vld [vmem:[%s0 + $0x9c] sm:$0xf]
  %v55 = vld [vmem:[%s0 + $0xa0] sm:$0xf]
  %v56 = vld [vmem:[%s0 + $0xa4] sm:$0xf]
  %v57 = vld [vmem:[%s0 + $0xa8] sm:$0xf]
  %v58 = vld [vmem:[%s0 + $0xac] sm:$0xf]
  %v59 = vld [vmem:[%s0 + $0xb0] sm:$0xf]
  %v60 = vld [vmem:[%s0 + $0xb4] sm:$0xf]
  %v61 = vld [vmem:[%s0 + $0xb8] sm:$0xf]
  %v62 = vld [vmem:[%s0 + $0xbc] sm:$0xf]
  %v63 = vld [vmem:[%s0 + $0xc0] sm:$0xf]
  %v64 = vld [vmem:[%s0 + $0xc4] sm:$0xf]
  %v65 = vld [vmem:[%s0 + $0xc8] sm:$0xf]
  %v66 = vld [vmem:[%s0 + $0xcc] sm:$0xf]
  %v67 = vld [vmem:[%s0 + $0xd0] sm:$0xf]
  %v68 = vld [vmem:[%s0 + $0xd4] sm:$0xf]
  %v69 = vld [vmem:[%s0 + $0xd8] sm:$0xf]
  %v70 = vld [vmem:[%s0 + $0xdc] sm:$0xf]
  %v71 = vld [vmem:[%s0 + $0xe0] sm:$0xf]
  %v72 = vld [vmem:[%s0 + $0xe4] sm:$0xf]
  %v73 = vld [vmem:[%s0 + $0xe8] sm:$0xf]
  %v74 = vld [vmem:[%s0 + $0xec] sm:$0xf]
  %v75 = vld [vmem:[%s0 + $0xf0] sm:$0xf]
  %v76 = vld [vmem:[%s0 + $0xf4] sm:$0xf]
  %v77 = vld [vmem:[%s0 + $0xf8] sm:$0xf]
  %v78 = vld [vmem:[%s0 + $0xfc] sm:$0xf]
  %v79 = vld [vmem:[%s0 + $0x100] sm:$0xf]
  %v80 = vld [vmem:[%s0 + $0x104] sm:$0xf]
  %v81 = vld [vmem:[%s0 + $0x108] sm:$0xf]
  %v82 = vld [vmem:[%s0 + $0x10c] sm:$0xf]
  %v83 = vld [vmem:[%s0 + $0x110] sm:$0xf]
  %v84 = vld [vmem:[%s0 + $0x114] sm:$0xf]
  %v85 = vld [vmem:[%s0 + $0x118] sm:$0xf]
  %v86 = vld [vmem:[%s0 + $0x11c] sm:$0xf]
  %v87 = vld [vmem:[%s0 + $0x120] sm:$0xf]
  %v88 = vld [vmem:[%s0 + $0x124] sm:$0xf]
  %v89 = vld [vmem:[%s0 + $0x128] sm:$0xf]
  %v90 = vld [vmem:[%s0 + $0x12c] sm:$0xf]
  %v91 = vld [vmem:[%s0 + $0x130] sm:$0xf]
  %v92 = vld [vmem:[%s0 + $0x134] sm:$0xf]
  %v93 = vld [vmem:[%s0 + $0x138] sm:$0xf]
  %v94 = vld [vmem:[%s0 + $0x13c] sm:$0xf]
  %v95 = vld [vmem:[%s0 + $0x140] sm:$0xf]
  %v96 = vld [vmem:[%s0 + $0x144] sm:$0xf]
  %v97 = vld [vmem:[%s0 + $0x148] sm:$0xf]
  %v98 = vld [vmem:[%s0 + $0x14c] sm:$0xf]
  %v99 = vld [vmem:[%s0 + $0x150] sm:$0xf]
  %v100 = vld [vmem:[%s0 + $0x154] sm:$0xf]
  %v101 = vld [vmem:[%s0 + $0x158] sm:$0xf]
  %v102 = vld [vmem:[%s0 + $0x15c] sm:$0xf]
  %v103 = vld [vmem:[%s0 + $0x160] sm:$0xf]
  %v104 = vld [vmem:[%s0 + $0x164] sm:$0xf]
  %v105 = vld [vmem:[%s0 + $0x168] sm:$0xf]
  %v106 = vld [vmem:[%s0 + $0x16c] sm:$0xf]
  %v107 = vld [vmem:[%s0 + $0x170] sm:$0xf]
  %v108 = vld [vmem:[%s0 + $0x174] sm:$0xf]
  %v109 = vld [vmem:[%s0 + $0x178] sm:$0xf]
  %v110 = vld [vmem:[%s0 + $0x17c] sm:$0xf]
  %v111 = vld [vmem:[%s0 + $0x180] sm:$0xf]
  %v112 = vld [vmem:[%s0 + $0x184] sm:$0xf]
  %v113 = vld [vmem:[%s0 + $0x188] sm:$0xf]
  %v114 = vld [vmem:[%s0 + $0x18c] sm:$0xf]
  %v115 = vld [vmem:[%s0 + $0x190] sm:$0xf]
  %v116 = vld [vmem:[%s0 + $0x194] sm:$0xf]
  %v117 = vld [vmem:[%s0 + $0x198] sm:$0xf]
  %v118 = vld [vmem:[%s0 + $0x19c] sm:$0xf]
  %v119 = vld [vmem:[%s0 + $0x1a0] sm:$0xf]
  %v120 = vld [vmem:[%s0 + $0x1a4] sm:$0xf]
  %v121 = vld [vmem:[%s0 + $0x1a8] sm:$0xf]
  %v122 = vld [vmem:[%s0 + $0x1ac] sm:$0xf]
  %v123 = vld [vmem:[%s0 + $0x1b0] sm:$0xf]
  %v124 = vld [vmem:[%s0 + $0x1b4] sm:$0xf]
  %v125 = vld [vmem:[%s0 + $0x1b8] sm:$0xf]
  %v126 = vld [vmem:[%s0 + $0x1bc] sm:$0xf]
  %v127 = vld [vmem:[%s0 + $0x1c0] sm:$0xf]
  %v128 = vld [vmem:[%s0 + $0x1c4] sm:$0xf]
  %v129 = vld [vmem:[%s0 + $0x1c8] sm:$0xf]
  %v130 = vld [vmem:[%s0 + $0x1cc] sm:$0xf]
  %v131 = vld [vmem:[%s0 + $0x1d0] sm:$0xf]
  %v132 = vld [vmem:[%s0 + $0x1d4] sm:$0xf]
  %v133 = vld [vmem:[%s0 + $0x1d8] sm:$0xf]
  %v134 = vld [vmem:[%s0 + $0x1dc] sm:$0xf]
  %v135 = vld [vmem:[%s0 + $0x1e0] sm:$0xf]
  %v136 = vld [vmem:[%s0 + $0x1e4] sm:$0xf]
  %v137 = vld [vmem:[%s0 + $0x1e8] sm:$0xf]
  %v138 = vld [vmem:[%s0 + $0x1ec] sm:$0xf]
  %v139 = vld [vmem:[%s0 + $0x1f0] sm:$0xf]
  %v140 = vld [vmem:[%s0 + $0x1f4] sm:$0xf]
  %v141 = vld [vmem:[%s0 + $0x1f8] sm:$0xf]
  %v142 = vld [vmem:[%s0 + $0x1fc] sm:$0xf]
  %v143 = vld [vmem:[%s0 + $0x200] sm:$0xf]
  %v144 = vld [vmem:[%s0 + $0x204] sm:$0xf]
  %v145 = vld [vmem:[%s0 + $0x208] sm:$0xf]
  %v146 = vld [vmem:[%s0 + $0x20c] sm:$0xf]
  %v147 = vld [vmem:[%s0 + $0x210] sm:$0xf]
  %v148 = vld [vmem:[%s0 + $0x214] sm:$0xf]
  %v149 = vld [vmem:[%s0 + $0x218] sm:$0xf]
  %v150 = vld [vmem:[%s0 + $0x21c] sm:$0xf]
  %v151 = vld [vmem:[%s0 + $0x220] sm:$0xf]
  %v152 = vld [vmem:[%s0 + $0x224] sm:$0xf]
  %v153 = vld [vmem:[%s0 + $0x228] sm:$0xf]
  %v154 = vld [vmem:[%s0 + $0x22c] sm:$0xf]
  %v155 = vld [vmem:[%s0 + $0x230] sm:$0xf]
  %v156 = vld [vmem:[%s0 + $0x234] sm:$0xf]
  %v157 = vld [vmem:[%s0 + $0x238] sm:$0xf]
  %v158 = vld [vmem:[%s0 + $0x23c] sm:$0xf]
  %v159 = vld [vmem:[%s0 + $0x240] sm:$0xf]
  %v160 = vld [vmem:[%s0 + $0x244] sm:$0xf]
  %v161 = vld [vmem:[%s0 + $0x248] sm:$0xf]
  %v162 = vld [vmem:[%s0 + $0x24c] sm:$0xf]
  %v163 = vld [vmem:[%s0 + $0x250] sm:$0xf]
  %v164 = vld [vmem:[%s0 + $0x254] sm:$0xf]
  %v165 = vld [vmem:[%s0 + $0x258] sm:$0xf]
  %v166 = vld [vmem:[%s0 + $0x25c] sm:$0xf]
  %v167 = vld [vmem:[%s0 + $0x260] sm:$0xf]
  %v168 = vld [vmem:[%s0 + $0x264] sm:$0xf]
  %v169 = vld [vmem:[%s0 + $0x268] sm:$0xf]
  %v170 = vld [vmem:[%s0 + $0x26c] sm:$0xf]
  %v171 = vld [vmem:[%s0 + $0x270] sm:$0xf]
  %v172 = vld [vmem:[%s0 + $0x274] sm:$0xf]
  %v173 = vld [vmem:[%s0 + $0x278] sm:$0xf]
  %v174 = vld [vmem:[%s0 + $0x27c] sm:$0xf]
  %v175 = vld [vmem:[%s0 + $0x280] sm:$0xf]
  %v176 = vld [vmem:[%s0 + $0x284] sm:$0xf]
  %v177 = vld [vmem:[%s0 + $0x288] sm:$0xf]
  %v178 = vld [vmem:[%s0 + $0x28c] sm:$0xf]
  %v179 = vld [vmem:[%s0 + $0x290] sm:$0xf]
  %v180 = vld [vmem:[%s0 + $0x294] sm:$0xf]
  %v181 = vld [vmem:[%s0 + $0x298] sm:$0xf]
  %v182 = vld [vmem:[%s0 + $0x29c] sm:$0xf]
  %v183 = vld [vmem:[%s0 + $0x2a0] sm:$0xf]
  %v184 = vld [vmem:[%s0 + $0x2a4] sm:$0xf]
  %v185 = vld [vmem:[%s0 + $0x2a8] sm:$0xf]
  %v186 = vld [vmem:[%s0 + $0x2ac] sm:$0xf]
  %v187 = vld [vmem:[%s0 + $0x2b0] sm:$0xf]
  %v188 = vld [vmem:[%s0 + $0x2b4] sm:$0xf]
  %v189 = vld [vmem:[%s0 + $0x2b8] sm:$0xf]
  %v190 = vld [vmem:[%s0 + $0x2bc] sm:$0xf]
  %v191 = vld [vmem:[%s0 + $0x2c0] sm:$0xf]
  %v192 = vld [vmem:[%s0 + $0x2c4] sm:$0xf]
  %v193 = vld [vmem:[%s0 + $0x2c8] sm:$0xf]
  %v194 = vld [vmem:[%s0 + $0x2cc] sm:$0xf]
  %v195 = vld [vmem:[%s0 + $0x2d0] sm:$0xf]
  %v196 = vld [vmem:[%s0 + $0x2d4] sm:$0xf]
  %v197 = vld [vmem:[%s0 + $0x2d8] sm:$0xf]
  %v198 = vld [vmem:[%s0 + $0x2dc] sm:$0xf]
  %v199 = vld [vmem:[%s0 + $0x2e0] sm:$0xf]
  %v200 = vld [vmem:[%s0 + $0x2e4] sm:$0xf]
  %v201 = vld [vmem:[%s0 + $0x2e8] sm:$0xf]
  %v202 = vld [vmem:[%s0 + $0x2ec] sm:$0xf]
  %v203 = vld [vmem:[%s0 + $0x2f0] sm:$0xf]
  %v204 = vld [vmem:[%s0 + $0x2f4] sm:$0xf]
  %v205 = vld [vmem:[%s0 + $0x2f8] sm:$0xf]
  %v206 = vld [vmem:[%s0 + $0x2fc] sm:$0xf]
  %v207 = vld [vmem:[%s0 + $0x300] sm:$0xf]
  %v208 = vld [vmem:[%s0 + $0x304] sm:$0xf]
  %v209 = vld [vmem:[%s0 + $0x308] sm:$0xf]
  %v210 = vld [vmem:[%s0 + $0x30c] sm:$0xf]
  %v211 = vld [vmem:[%s0 + $0x310] sm:$0xf]
  %v212 = vld [vmem:[%s0 + $0x314] sm:$0xf]
  %v213 = vld [vmem:[%s0 + $0x318] sm:$0xf]
  %v214 = vld [vmem:[%s0 + $0x31c] sm:$0xf]
  %v215 = vld [vmem:[%s0 + $0x320] sm:$0xf]
  %v216 = vld [vmem:[%s0 + $0x324] sm:$0xf]
  %v217 = vld [vmem:[%s0 + $0x328] sm:$0xf]
  %v218 = vld [vmem:[%s0 + $0x32c] sm:$0xf]
  %v219 = vld [vmem:[%s0 + $0x330] sm:$0xf]
  %v220 = vld [vmem:[%s0 + $0x334] sm:$0xf]
  %v221 = vld [vmem:[%s0 + $0x338] sm:$0xf]
  %v222 = vld [vmem:[%s0 + $0x33c] sm:$0xf]
  %v223 = vld [vmem:[%s0 + $0x340] sm:$0xf]
  %v224 = vld [vmem:[%s0 + $0x344] sm:$0xf]
  %v225 = vld [vmem:[%s0 + $0x348] sm:$0xf]
  %v226 = vld [vmem:[%s0 + $0x34c] sm:$0xf]
  %v227 = vld [vmem:[%s0 + $0x350] sm:$0xf]
  %v228 = vld [vmem:[%s0 + $0x354] sm:$0xf]
  %v229 = vld [vmem:[%s0 + $0x358] sm:$0xf]
  %v230 = vld [vmem:[%s0 + $0x35c] sm:$0xf]
  %v231 = vld [vmem:[%s0 + $0x360] sm:$0xf]
  %v232 = vld [vmem:[%s0 + $0x364] sm:$0xf]
  %v233 = vld [vmem:[%s0 + $0x368] sm:$0xf]
  %v234 = vld [vmem:[%s0 + $0x36c] sm:$0xf]
  %v235 = vld [vmem:[%s0 + $0x370] sm:$0xf]
  %v236 = vld [vmem:[%s0 + $0x374] sm:$0xf]
  %v237 = vld [vmem:[%s0 + $0x378] sm:$0xf]
  %v238 = vld [vmem:[%s0 + $0x37c] sm:$0xf]
  %v239 = vld [vmem:[%s0 + $0x380] sm:$0xf]
  %v240 = vld [vmem:[%s0 + $0x384] sm:$0xf]
  %v241 = vld [vmem:[%s0 + $0x388] sm:$0xf]
  %v242 = vld [vmem:[%s0 + $0x38c] sm:$0xf]
  %v243 = vld [vmem:[%s0 + $0x390] sm:$0xf]
  %v244 = vld [vmem:[%s0 + $0x394] sm:$0xf]
  %v245 = vld [vmem:[%s0 + $0x398] sm:$0xf]
  %v246 = vld [vmem:[%s0 + $0x39c] sm:$0xf]
  %v247 = vld [vmem:[%s0 + $0x3a0] sm:$0xf]
  %v248 = vld [vmem:[%s0 + $0x3a4] sm:$0xf]
  %v249 = vld [vmem:[%s0 + $0x3a8] sm:$0xf]
  %v250 = vld [vmem:[%s0 + $0x3ac] sm:$0xf]
  %v251 = vld [vmem:[%s0 + $0x3b0] sm:$0xf]
  %v252 = vld [vmem:[%s0 + $0x3b4] sm:$0xf]
  %v253 = vld [vmem:[%s0 + $0x3b8] sm:$0xf]
  %v254 = vld [vmem:[%s0 + $0x3bc] sm:$0xf]
  %v255 = vld [vmem:[%s0 + $0x3c0] sm:$0xf]
  %v256 = vld [vmem:[%s0 + $0x3c4] sm:$0xf]
  %v257 = vld [vmem:[%s0 + $0x3c8] sm:$0xf]
  %v258 = vld [vmem:[%s0 + $0x3cc] sm:$0xf]
  %v259 = vld [vmem:[%s0 + $0x3d0] sm:$0xf]
  %v260 = vld [vmem:[%s0 + $0x3d4] sm:$0xf]
  %v261 = vld [vmem:[%s0 + $0x3d8] sm:$0xf]
  %v262 = vld [vmem:[%s0 + $0x3dc] sm:$0xf]
  %v263 = vld [vmem:[%s0 + $0x3e0] sm:$0xf]
  %v264 = vld [vmem:[%s0 + $0x3e4] sm:$0xf]
  %v265 = vld [vmem:[%s0 + $0x3e8] sm:$0xf]
  %v266 = vld [vmem:[%s0 + $0x3ec] sm:$0xf]
  %v267 = vld [vmem:[%s0 + $0x3f0] sm:$0xf]
  %v268 = vld [vmem:[%s0 + $0x3f4] sm:$0xf]
  %v269 = vld [vmem:[%s0 + $0x3f8] sm:$0xf]
  %v270 = vld [vmem:[%s0 + $0x3fc] sm:$0xf]
  %v271 = vld [vmem:[%s1] sm:$0xf]
  %v272 = vld [vmem:[%s1 + $0x4] sm:$0xf]
  %v273 = vld [vmem:[%s1 + $0x8] sm:$0xf]
  %v274 = vld [vmem:[%s1 + $0xc] sm:$0x3]
  %v275 = vld [vmem:[%s2] sm:$0x1]
  %v277 = vperm.slane %v275, 0
  %v535 = vunpack.c.l.b16 %v15
  %v536 = vunpack.c.l.b16 %v16
  %v537 = vunpack.c.l.b16 %v17
  %v538 = vunpack.c.l.b16 %v18
  %v539 = vunpack.c.l.b16 %v19
  %v540 = vunpack.c.l.b16 %v20
  %v541 = vunpack.c.l.b16 %v21
  %v542 = vunpack.c.l.b16 %v22
  %v543 = vunpack.c.l.b16 %v23
  %v544 = vunpack.c.l.b16 %v24
  %v545 = vunpack.c.l.b16 %v25
  %v546 = vunpack.c.l.b16 %v26
  %v547 = vunpack.c.l.b16 %v27
  %v548 = vunpack.c.l.b16 %v28
  %v549 = vunpack.c.l.b16 %v29
  %v550 = vunpack.c.l.b16 %v30
  %v551 = vunpack.c.l.b16 %v31
  %v552 = vunpack.c.l.b16 %v32
  %v553 = vunpack.c.l.b16 %v33
  %v554 = vunpack.c.l.b16 %v34
  %v555 = vunpack.c.l.b16 %v35
  %v556 = vunpack.c.l.b16 %v36
  %v557 = vunpack.c.l.b16 %v37
  %v558 = vunpack.c.l.b16 %v38
  %v559 = vunpack.c.l.b16 %v39
  %v560 = vunpack.c.l.b16 %v40
  %v561 = vunpack.c.l.b16 %v41
  %v562 = vunpack.c.l.b16 %v42
  %v563 = vunpack.c.l.b16 %v43
  %v564 = vunpack.c.l.b16 %v44
  %v565 = vunpack.c.l.b16 %v45
  %v566 = vunpack.c.l.b16 %v46
  %v567 = vunpack.c.l.b16 %v47
  %v568 = vunpack.c.l.b16 %v48
  %v569 = vunpack.c.l.b16 %v49
  %v570 = vunpack.c.l.b16 %v50
  %v571 = vunpack.c.l.b16 %v51
  %v572 = vunpack.c.l.b16 %v52
  %v573 = vunpack.c.l.b16 %v53
  %v574 = vunpack.c.l.b16 %v54
  %v575 = vunpack.c.l.b16 %v55
  %v576 = vunpack.c.l.b16 %v56
  %v577 = vunpack.c.l.b16 %v57
  %v578 = vunpack.c.l.b16 %v58
  %v579 = vunpack.c.l.b16 %v59
  %v580 = vunpack.c.l.b16 %v60
  %v581 = vunpack.c.l.b16 %v61
  %v582 = vunpack.c.l.b16 %v62
  %v583 = vunpack.c.l.b16 %v63
  %v584 = vunpack.c.l.b16 %v64
  %v585 = vunpack.c.l.b16 %v65
  %v586 = vunpack.c.l.b16 %v66
  %v587 = vunpack.c.l.b16 %v67
  %v588 = vunpack.c.l.b16 %v68
  %v589 = vunpack.c.l.b16 %v69
  %v590 = vunpack.c.l.b16 %v70
  %v591 = vunpack.c.l.b16 %v71
  %v592 = vunpack.c.l.b16 %v72
  %v593 = vunpack.c.l.b16 %v73
  %v594 = vunpack.c.l.b16 %v74
  %v595 = vunpack.c.l.b16 %v75
  %v596 = vunpack.c.l.b16 %v76
  %v597 = vunpack.c.l.b16 %v77
  %v598 = vunpack.c.l.b16 %v78
  %v599 = vunpack.c.l.b16 %v79
  %v600 = vunpack.c.l.b16 %v80
  %v601 = vunpack.c.l.b16 %v81
  %v602 = vunpack.c.l.b16 %v82
  %v603 = vunpack.c.l.b16 %v83
  %v604 = vunpack.c.l.b16 %v84
  %v605 = vunpack.c.l.b16 %v85
  %v606 = vunpack.c.l.b16 %v86
  %v607 = vunpack.c.l.b16 %v87
  %v608 = vunpack.c.l.b16 %v88
  %v609 = vunpack.c.l.b16 %v89
  %v610 = vunpack.c.l.b16 %v90
  %v611 = vunpack.c.l.b16 %v91
  %v612 = vunpack.c.l.b16 %v92
  %v613 = vunpack.c.l.b16 %v93
  %v614 = vunpack.c.l.b16 %v94
  %v615 = vunpack.c.l.b16 %v95
  %v616 = vunpack.c.l.b16 %v96
  %v617 = vunpack.c.l.b16 %v97
  %v618 = vunpack.c.l.b16 %v98
  %v619 = vunpack.c.l.b16 %v99
  %v620 = vunpack.c.l.b16 %v100
  %v621 = vunpack.c.l.b16 %v101
  %v622 = vunpack.c.l.b16 %v102
  %v623 = vunpack.c.l.b16 %v103
  %v624 = vunpack.c.l.b16 %v104
  %v625 = vunpack.c.l.b16 %v105
  %v626 = vunpack.c.l.b16 %v106
  %v627 = vunpack.c.l.b16 %v107
  %v628 = vunpack.c.l.b16 %v108
  %v629 = vunpack.c.l.b16 %v109
  %v630 = vunpack.c.l.b16 %v110
  %v631 = vunpack.c.l.b16 %v111
  %v632 = vunpack.c.l.b16 %v112
  %v633 = vunpack.c.l.b16 %v113
  %v634 = vunpack.c.l.b16 %v114
  %v635 = vunpack.c.l.b16 %v115
  %v636 = vunpack.c.l.b16 %v116
  %v637 = vunpack.c.l.b16 %v117
  %v638 = vunpack.c.l.b16 %v118
  %v639 = vunpack.c.l.b16 %v119
  %v640 = vunpack.c.l.b16 %v120
  %v641 = vunpack.c.l.b16 %v121
  %v642 = vunpack.c.l.b16 %v122
  %v643 = vunpack.c.l.b16 %v123
  %v644 = vunpack.c.l.b16 %v124
  %v645 = vunpack.c.l.b16 %v125
  %v646 = vunpack.c.l.b16 %v126
  %v647 = vunpack.c.l.b16 %v127
  %v648 = vunpack.c.l.b16 %v128
  %v649 = vunpack.c.l.b16 %v129
  %v650 = vunpack.c.l.b16 %v130
  %v651 = vunpack.c.l.b16 %v131
  %v652 = vunpack.c.l.b16 %v132
  %v653 = vunpack.c.l.b16 %v133
  %v654 = vunpack.c.l.b16 %v134
  %v655 = vunpack.c.l.b16 %v135
  %v656 = vunpack.c.l.b16 %v136
  %v657 = vunpack.c.l.b16 %v137
  %v658 = vunpack.c.l.b16 %v138
  %v659 = vunpack.c.l.b16 %v139
  %v660 = vunpack.c.l.b16 %v140
  %v661 = vunpack.c.l.b16 %v141
  %v662 = vunpack.c.l.b16 %v142
  %v663 = vunpack.c.l.b16 %v143
  %v664 = vunpack.c.l.b16 %v144
  %v665 = vunpack.c.l.b16 %v145
  %v666 = vunpack.c.l.b16 %v146
  %v667 = vunpack.c.l.b16 %v147
  %v668 = vunpack.c.l.b16 %v148
  %v669 = vunpack.c.l.b16 %v149
  %v670 = vunpack.c.l.b16 %v150
  %v671 = vunpack.c.l.b16 %v151
  %v672 = vunpack.c.l.b16 %v152
  %v673 = vunpack.c.l.b16 %v153
  %v674 = vunpack.c.l.b16 %v154
  %v675 = vunpack.c.l.b16 %v155
  %v676 = vunpack.c.l.b16 %v156
  %v677 = vunpack.c.l.b16 %v157
  %v678 = vunpack.c.l.b16 %v158
  %v679 = vunpack.c.l.b16 %v159
  %v680 = vunpack.c.l.b16 %v160
  %v681 = vunpack.c.l.b16 %v161
  %v682 = vunpack.c.l.b16 %v162
  %v683 = vunpack.c.l.b16 %v163
  %v684 = vunpack.c.l.b16 %v164
  %v685 = vunpack.c.l.b16 %v165
  %v686 = vunpack.c.l.b16 %v166
  %v687 = vunpack.c.l.b16 %v167
  %v688 = vunpack.c.l.b16 %v168
  %v689 = vunpack.c.l.b16 %v169
  %v690 = vunpack.c.l.b16 %v170
  %v691 = vunpack.c.l.b16 %v171
  %v692 = vunpack.c.l.b16 %v172
  %v693 = vunpack.c.l.b16 %v173
  %v694 = vunpack.c.l.b16 %v174
  %v695 = vunpack.c.l.b16 %v175
  %v696 = vunpack.c.l.b16 %v176
  %v697 = vunpack.c.l.b16 %v177
  %v698 = vunpack.c.l.b16 %v178
  %v699 = vunpack.c.l.b16 %v179
  %v700 = vunpack.c.l.b16 %v180
  %v701 = vunpack.c.l.b16 %v181
  %v702 = vunpack.c.l.b16 %v182
  %v703 = vunpack.c.l.b16 %v183
  %v704 = vunpack.c.l.b16 %v184
  %v705 = vunpack.c.l.b16 %v185
  %v706 = vunpack.c.l.b16 %v186
  %v707 = vunpack.c.l.b16 %v187
  %v708 = vunpack.c.l.b16 %v188
  %v709 = vunpack.c.l.b16 %v189
  %v710 = vunpack.c.l.b16 %v190
  %v711 = vunpack.c.l.b16 %v191
  %v712 = vunpack.c.l.b16 %v192
  %v713 = vunpack.c.l.b16 %v193
  %v714 = vunpack.c.l.b16 %v194
  %v715 = vunpack.c.l.b16 %v195
  %v716 = vunpack.c.l.b16 %v196
  %v717 = vunpack.c.l.b16 %v197
  %v718 = vunpack.c.l.b16 %v198
  %v719 = vunpack.c.l.b16 %v199
  %v720 = vunpack.c.l.b16 %v200
  %v721 = vunpack.c.l.b16 %v201
  %v722 = vunpack.c.l.b16 %v202
  %v723 = vunpack.c.l.b16 %v203
  %v724 = vunpack.c.l.b16 %v204
  %v725 = vunpack.c.l.b16 %v205
  %v726 = vunpack.c.l.b16 %v206
  %v727 = vunpack.c.l.b16 %v207
  %v728 = vunpack.c.l.b16 %v208
  %v729 = vunpack.c.l.b16 %v209
  %v730 = vunpack.c.l.b16 %v210
  %v731 = vunpack.c.l.b16 %v211
  %v732 = vunpack.c.l.b16 %v212
  %v733 = vunpack.c.l.b16 %v213
  %v734 = vunpack.c.l.b16 %v214
  %v735 = vunpack.c.l.b16 %v215
  %v736 = vunpack.c.l.b16 %v216
  %v737 = vunpack.c.l.b16 %v217
  %v738 = vunpack.c.l.b16 %v218
  %v739 = vunpack.c.l.b16 %v219
  %v740 = vunpack.c.l.b16 %v220
  %v741 = vunpack.c.l.b16 %v221
  %v742 = vunpack.c.l.b16 %v222
  %v743 = vunpack.c.l.b16 %v223
  %v744 = vunpack.c.l.b16 %v224
  %v745 = vunpack.c.l.b16 %v225
  %v746 = vunpack.c.l.b16 %v226
  %v747 = vunpack.c.l.b16 %v227
  %v748 = vunpack.c.l.b16 %v228
  %v749 = vunpack.c.l.b16 %v229
  %v750 = vunpack.c.l.b16 %v230
  %v751 = vunpack.c.l.b16 %v231
  %v752 = vunpack.c.l.b16 %v232
  %v753 = vunpack.c.l.b16 %v233
  %v754 = vunpack.c.l.b16 %v234
  %v755 = vunpack.c.l.b16 %v235
  %v756 = vunpack.c.l.b16 %v236
  %v757 = vunpack.c.l.b16 %v237
  %v758 = vunpack.c.l.b16 %v238
  %v759 = vunpack.c.l.b16 %v239
  %v760 = vunpack.c.l.b16 %v240
  %v761 = vunpack.c.l.b16 %v241
  %v762 = vunpack.c.l.b16 %v242
  %v763 = vunpack.c.l.b16 %v243
  %v764 = vunpack.c.l.b16 %v244
  %v765 = vunpack.c.l.b16 %v245
  %v766 = vunpack.c.l.b16 %v246
  %v767 = vunpack.c.l.b16 %v247
  %v768 = vunpack.c.l.b16 %v248
  %v769 = vunpack.c.l.b16 %v249
  %v770 = vunpack.c.l.b16 %v250
  %v771 = vunpack.c.l.b16 %v251
  %v772 = vunpack.c.l.b16 %v252
  %v773 = vunpack.c.l.b16 %v253
  %v774 = vunpack.c.l.b16 %v254
  %v775 = vunpack.c.l.b16 %v255
  %v776 = vunpack.c.l.b16 %v256
  %v777 = vunpack.c.l.b16 %v257
  %v778 = vunpack.c.l.b16 %v258
  %v779 = vunpack.c.l.b16 %v259
  %v780 = vunpack.c.l.b16 %v260
  %v781 = vunpack.c.l.b16 %v261
  %v782 = vunpack.c.l.b16 %v262
  %v783 = vunpack.c.l.b16 %v263
  %v784 = vunpack.c.l.b16 %v264
  %v785 = vunpack.c.l.b16 %v265
  %v786 = vunpack.c.l.b16 %v266
  %v787 = vunpack.c.l.b16 %v267
  %v788 = vunpack.c.l.b16 %v268
  %v789 = vunpack.c.l.b16 %v269
  %v790 = vunpack.c.l.b16 %v270
  %v791 = vpack.c.b16 %v536, %v535
  %v792 = vpack.c.b16 %v538, %v537
  %v793 = vpack.c.b16 %v540, %v539
  %v794 = vpack.c.b16 %v542, %v541
  %v795 = vpack.c.b16 %v544, %v543
  %v796 = vpack.c.b16 %v546, %v545
  %v797 = vpack.c.b16 %v548, %v547
  %v798 = vpack.c.b16 %v550, %v549
  %v799 = vpack.c.b16 %v552, %v551
  %v800 = vpack.c.b16 %v554, %v553
  %v801 = vpack.c.b16 %v556, %v555
  %v802 = vpack.c.b16 %v558, %v557
  %v803 = vpack.c.b16 %v560, %v559
  %v804 = vpack.c.b16 %v562, %v561
  %v805 = vpack.c.b16 %v564, %v563
  %v806 = vpack.c.b16 %v566, %v565
  %v807 = vpack.c.b16 %v568, %v567
  %v808 = vpack.c.b16 %v570, %v569
  %v809 = vpack.c.b16 %v572, %v571
  %v810 = vpack.c.b16 %v574, %v573
  %v811 = vpack.c.b16 %v576, %v575
  %v812 = vpack.c.b16 %v578, %v577
  %v813 = vpack.c.b16 %v580, %v579
  %v814 = vpack.c.b16 %v582, %v581
  %v815 = vpack.c.b16 %v584, %v583
  %v816 = vpack.c.b16 %v586, %v585
  %v817 = vpack.c.b16 %v588, %v587
  %v818 = vpack.c.b16 %v590, %v589
  %v819 = vpack.c.b16 %v592, %v591
  %v820 = vpack.c.b16 %v594, %v593
  %v821 = vpack.c.b16 %v596, %v595
  %v822 = vpack.c.b16 %v598, %v597
  %v823 = vpack.c.b16 %v600, %v599
  %v824 = vpack.c.b16 %v602, %v601
  %v825 = vpack.c.b16 %v604, %v603
  %v826 = vpack.c.b16 %v606, %v605
  %v827 = vpack.c.b16 %v608, %v607
  %v828 = vpack.c.b16 %v610, %v609
  %v829 = vpack.c.b16 %v612, %v611
  %v830 = vpack.c.b16 %v614, %v613
  %v831 = vpack.c.b16 %v616, %v615
  %v832 = vpack.c.b16 %v618, %v617
  %v833 = vpack.c.b16 %v620, %v619
  %v834 = vpack.c.b16 %v622, %v621
  %v835 = vpack.c.b16 %v624, %v623
  %v836 = vpack.c.b16 %v626, %v625
  %v837 = vpack.c.b16 %v628, %v627
  %v838 = vpack.c.b16 %v630, %v629
  %v839 = vpack.c.b16 %v632, %v631
  %v840 = vpack.c.b16 %v634, %v633
  %v841 = vpack.c.b16 %v636, %v635
  %v842 = vpack.c.b16 %v638, %v637
  %v843 = vpack.c.b16 %v640, %v639
  %v844 = vpack.c.b16 %v642, %v641
  %v845 = vpack.c.b16 %v644, %v643
  %v846 = vpack.c.b16 %v646, %v645
  %v847 = vpack.c.b16 %v648, %v647
  %v848 = vpack.c.b16 %v650, %v649
  %v849 = vpack.c.b16 %v652, %v651
  %v850 = vpack.c.b16 %v654, %v653
  %v851 = vpack.c.b16 %v656, %v655
  %v852 = vpack.c.b16 %v658, %v657
  %v853 = vpack.c.b16 %v660, %v659
  %v854 = vpack.c.b16 %v662, %v661
  %v855 = vpack.c.b16 %v664, %v663
  %v856 = vpack.c.b16 %v666, %v665
  %v857 = vpack.c.b16 %v668, %v667
  %v858 = vpack.c.b16 %v670, %v669
  %v859 = vpack.c.b16 %v672, %v671
  %v860 = vpack.c.b16 %v674, %v673
  %v861 = vpack.c.b16 %v676, %v675
  %v862 = vpack.c.b16 %v678, %v677
  %v863 = vpack.c.b16 %v680, %v679
  %v864 = vpack.c.b16 %v682, %v681
  %v865 = vpack.c.b16 %v684, %v683
  %v866 = vpack.c.b16 %v686, %v685
  %v867 = vpack.c.b16 %v688, %v687
  %v868 = vpack.c.b16 %v690, %v689
  %v869 = vpack.c.b16 %v692, %v691
  %v870 = vpack.c.b16 %v694, %v693
  %v871 = vpack.c.b16 %v696, %v695
  %v872 = vpack.c.b16 %v698, %v697
  %v873 = vpack.c.b16 %v700, %v699
  %v874 = vpack.c.b16 %v702, %v701
  %v875 = vpack.c.b16 %v704, %v703
  %v876 = vpack.c.b16 %v706, %v705
  %v877 = vpack.c.b16 %v708, %v707
  %v878 = vpack.c.b16 %v710, %v709
  %v879 = vpack.c.b16 %v712, %v711
  %v880 = vpack.c.b16 %v714, %v713
  %v881 = vpack.c.b16 %v716, %v715
  %v882 = vpack.c.b16 %v718, %v717
  %v883 = vpack.c.b16 %v720, %v719
  %v884 = vpack.c.b16 %v722, %v721
  %v885 = vpack.c.b16 %v724, %v723
  %v886 = vpack.c.b16 %v726, %v725
  %v887 = vpack.c.b16 %v728, %v727
  %v888 = vpack.c.b16 %v730, %v729
  %v889 = vpack.c.b16 %v732, %v731
  %v890 = vpack.c.b16 %v734, %v733
  %v891 = vpack.c.b16 %v736, %v735
  %v892 = vpack.c.b16 %v738, %v737
  %v893 = vpack.c.b16 %v740, %v739
  %v894 = vpack.c.b16 %v742, %v741
  %v895 = vpack.c.b16 %v744, %v743
  %v896 = vpack.c.b16 %v746, %v745
  %v897 = vpack.c.b16 %v748, %v747
  %v898 = vpack.c.b16 %v750, %v749
  %v899 = vpack.c.b16 %v752, %v751
  %v900 = vpack.c.b16 %v754, %v753
  %v901 = vpack.c.b16 %v756, %v755
  %v902 = vpack.c.b16 %v758, %v757
  %v903 = vpack.c.b16 %v760, %v759
  %v904 = vpack.c.b16 %v762, %v761
  %v905 = vpack.c.b16 %v764, %v763
  %v906 = vpack.c.b16 %v766, %v765
  %v907 = vpack.c.b16 %v768, %v767
  %v908 = vpack.c.b16 %v770, %v769
  %v909 = vpack.c.b16 %v772, %v771
  %v910 = vpack.c.b16 %v774, %v773
  %v911 = vpack.c.b16 %v776, %v775
  %v912 = vpack.c.b16 %v778, %v777
  %v913 = vpack.c.b16 %v780, %v779
  %v914 = vpack.c.b16 %v782, %v781
  %v915 = vpack.c.b16 %v784, %v783
  %v916 = vpack.c.b16 %v786, %v785
  %v917 = vpack.c.b16 %v788, %v787
  %v918 = vpack.c.b16 %v790, %v789
  %v923 = vunpack.c.l.b16 %v271
  %v924 = vunpack.c.l.b16 %v272
  %v925 = vunpack.c.l.b16 %v273
  %v926 = vunpack.c.l.b16 %v274
  %v927 = vpack.c.b16 %v924, %v923
  %v928 = vpack.c.b16 %v926, %v925
  %vm930 = vcmask 220160
  %v932 = vsel %vm930, %v791, 0
  %v935 = vsel %vm930, %v792, 0
  %v938 = vsel %vm930, %v793, 0
  %v941 = vsel %vm930, %v794, 0
  %v944 = vsel %vm930, %v795, 0
  %v947 = vsel %vm930, %v796, 0
  %v950 = vsel %vm930, %v797, 0
  %v953 = vsel %vm930, %v798, 0
  %v956 = vsel %vm930, %v799, 0
  %v959 = vsel %vm930, %v800, 0
  %v962 = vsel %vm930, %v801, 0
  %v965 = vsel %vm930, %v802, 0
  %v968 = vsel %vm930, %v803, 0
  %v971 = vsel %vm930, %v804, 0
  %v974 = vsel %vm930, %v805, 0
  %v977 = vsel %vm930, %v806, 0
  %v980 = vsel %vm930, %v807, 0
  %v983 = vsel %vm930, %v808, 0
  %v986 = vsel %vm930, %v809, 0
  %v989 = vsel %vm930, %v810, 0
  %v992 = vsel %vm930, %v811, 0
  %v995 = vsel %vm930, %v812, 0
  %v998 = vsel %vm930, %v813, 0
  %v1001 = vsel %vm930, %v814, 0
  %v1004 = vsel %vm930, %v815, 0
  %v1007 = vsel %vm930, %v816, 0
  %v1010 = vsel %vm930, %v817, 0
  %v1013 = vsel %vm930, %v818, 0
  %v1016 = vsel %vm930, %v819, 0
  %v1019 = vsel %vm930, %v820, 0
  %v1022 = vsel %vm930, %v821, 0
  %v1025 = vsel %vm930, %v822, 0
  %v1028 = vsel %vm930, %v823, 0
  %v1031 = vsel %vm930, %v824, 0
  %v1034 = vsel %vm930, %v825, 0
  %v1037 = vsel %vm930, %v826, 0
  %v1040 = vsel %vm930, %v827, 0
  %v1043 = vsel %vm930, %v828, 0
  %v1046 = vsel %vm930, %v829, 0
  %v1049 = vsel %vm930, %v830, 0
  %v1052 = vsel %vm930, %v831, 0
  %v1055 = vsel %vm930, %v832, 0
  %v1058 = vsel %vm930, %v833, 0
  %v1061 = vsel %vm930, %v834, 0
  %v1064 = vsel %vm930, %v835, 0
  %v1067 = vsel %vm930, %v836, 0
  %v1070 = vsel %vm930, %v837, 0
  %v1073 = vsel %vm930, %v838, 0
  %v1076 = vsel %vm930, %v839, 0
  %v1079 = vsel %vm930, %v840, 0
  %v1082 = vsel %vm930, %v841, 0
  %v1085 = vsel %vm930, %v842, 0
  %v1088 = vsel %vm930, %v843, 0
  %v1091 = vsel %vm930, %v844, 0
  %v1094 = vsel %vm930, %v845, 0
  %v1097 = vsel %vm930, %v846, 0
  %v1100 = vsel %vm930, %v847, 0
  %v1103 = vsel %vm930, %v848, 0
  %v1106 = vsel %vm930, %v849, 0
  %v1109 = vsel %vm930, %v850, 0
  %v1112 = vsel %vm930, %v851, 0
  %v1115 = vsel %vm930, %v852, 0
  %v1118 = vsel %vm930, %v853, 0
  %v1121 = vsel %vm930, %v854, 0
  %v1124 = vsel %vm930, %v855, 0
  %v1127 = vsel %vm930, %v856, 0
  %v1130 = vsel %vm930, %v857, 0
  %v1133 = vsel %vm930, %v858, 0
  %v1136 = vsel %vm930, %v859, 0
  %v1139 = vsel %vm930, %v860, 0
  %v1142 = vsel %vm930, %v861, 0
  %v1145 = vsel %vm930, %v862, 0
  %v1148 = vsel %vm930, %v863, 0
  %v1151 = vsel %vm930, %v864, 0
  %v1154 = vsel %vm930, %v865, 0
  %v1157 = vsel %vm930, %v866, 0
  %v1160 = vsel %vm930, %v867, 0
  %v1163 = vsel %vm930, %v868, 0
  %v1166 = vsel %vm930, %v869, 0
  %v1169 = vsel %vm930, %v870, 0
  %v1172 = vsel %vm930, %v871, 0
  %v1175 = vsel %vm930, %v872, 0
  %v1178 = vsel %vm930, %v873, 0
  %v1181 = vsel %vm930, %v874, 0
  %v1184 = vsel %vm930, %v875, 0
  %v1187 = vsel %vm930, %v876, 0
  %v1190 = vsel %vm930, %v877, 0
  %v1193 = vsel %vm930, %v878, 0
  %v1196 = vsel %vm930, %v879, 0
  %v1199 = vsel %vm930, %v880, 0
  %v1202 = vsel %vm930, %v881, 0
  %v1205 = vsel %vm930, %v882, 0
  %v1208 = vsel %vm930, %v883, 0
  %v1211 = vsel %vm930, %v884, 0
  %v1214 = vsel %vm930, %v885, 0
  %v1217 = vsel %vm930, %v886, 0
  %v1220 = vsel %vm930, %v887, 0
  %v1223 = vsel %vm930, %v888, 0
  %v1226 = vsel %vm930, %v889, 0
  %v1229 = vsel %vm930, %v890, 0
  %v1232 = vsel %vm930, %v891, 0
  %v1235 = vsel %vm930, %v892, 0
  %v1238 = vsel %vm930, %v893, 0
  %v1241 = vsel %vm930, %v894, 0
  %v1244 = vsel %vm930, %v895, 0
  %v1247 = vsel %vm930, %v896, 0
  %v1250 = vsel %vm930, %v897, 0
  %v1253 = vsel %vm930, %v898, 0
  %v1256 = vsel %vm930, %v899, 0
  %v1259 = vsel %vm930, %v900, 0
  %v1262 = vsel %vm930, %v901, 0
  %v1265 = vsel %vm930, %v902, 0
  %v1268 = vsel %vm930, %v903, 0
  %v1271 = vsel %vm930, %v904, 0
  %v1274 = vsel %vm930, %v905, 0
  %v1277 = vsel %vm930, %v906, 0
  %v1280 = vsel %vm930, %v907, 0
  %v1283 = vsel %vm930, %v908, 0
  %v1286 = vsel %vm930, %v909, 0
  %v1289 = vsel %vm930, %v910, 0
  %v1292 = vsel %vm930, %v911, 0
  %v1295 = vsel %vm930, %v912, 0
  %v1298 = vsel %vm930, %v913, 0
  %v1301 = vsel %vm930, %v914, 0
  %v1304 = vsel %vm930, %v915, 0
  %v1307 = vsel %vm930, %v916, 0
  %v1310 = vsel %vm930, %v917, 0
  %v1313 = vsel %vm930, %v918, 0
  %vm1315 = vcmask 1044480
  %vm1316 = vcmask 1045504
  %v1317 = vsel %vm1315, 4294967295, 65535
  %v1318 = vsel %vm1316, %v1317, 0
  %v1320 = vand.u32 %v928, %v1318
  %1322 = vmatpush.bf16.msra.mxu0 0
  %1323 = vmatpush.bf16.msra.mxu0 0
  %1324 = vmatpush.bf16.msra.mxu0 0
  %1325 = vmatpush.bf16.msra.mxu0 0
  %1326 = vmatpush.bf16.msra.mxu0 0
  %1327 = vmatpush.bf16.msra.mxu0 0
  %1328 = vmatpush.bf16.msra.mxu0 %v1320
  %1329 = vmatpush.bf16.msra.mxu0 %v927
  %1330 = vmatmul.bf16.gmra.mxu0 %v932
  %v1331 = vpop.f32.mrf.mxu0
  %v1332 = vadd.f32 %v277, %v1331
  %v1333 = vpop.f32.mrf.mxu0
  %v1334 = vadd.f32 %v277, %v1333
  %1335 = vmatmul.bf16.gmra.mxu0 %v935
  %v1336 = vpop.f32.mrf.mxu0
  %v1337 = vadd.f32 %v277, %v1336
  %v1338 = vpop.f32.mrf.mxu0
  %v1339 = vadd.f32 %v277, %v1338
  %1340 = vmatmul.bf16.gmra.mxu0 %v938
  %v1341 = vpop.f32.mrf.mxu0
  %v1342 = vadd.f32 %v277, %v1341
  %v1343 = vpop.f32.mrf.mxu0
  %v1344 = vadd.f32 %v277, %v1343
  %1345 = vmatmul.bf16.gmra.mxu0 %v941
  %v1346 = vpop.f32.mrf.mxu0
  %v1347 = vadd.f32 %v277, %v1346
  %v1348 = vpop.f32.mrf.mxu0
  %v1349 = vadd.f32 %v277, %v1348
  %1350 = vmatmul.bf16.gmra.mxu0 %v944
  %v1351 = vpop.f32.mrf.mxu0
  %v1352 = vadd.f32 %v277, %v1351
  %v1353 = vpop.f32.mrf.mxu0
  %v1354 = vadd.f32 %v277, %v1353
  %1355 = vmatmul.bf16.gmra.mxu0 %v947
  %v1356 = vpop.f32.mrf.mxu0
  %v1357 = vadd.f32 %v277, %v1356
  %v1358 = vpop.f32.mrf.mxu0
  %v1359 = vadd.f32 %v277, %v1358
  %1360 = vmatmul.bf16.gmra.mxu0 %v950
  %v1361 = vpop.f32.mrf.mxu0
  %v1362 = vadd.f32 %v277, %v1361
  %v1363 = vpop.f32.mrf.mxu0
  %v1364 = vadd.f32 %v277, %v1363
  %1365 = vmatmul.bf16.gmra.mxu0 %v953
  %v1366 = vpop.f32.mrf.mxu0
  %v1367 = vadd.f32 %v277, %v1366
  %v1368 = vpop.f32.mrf.mxu0
  %v1369 = vadd.f32 %v277, %v1368
  %1370 = vmatmul.bf16.gmra.mxu0 %v956
  %v1371 = vpop.f32.mrf.mxu0
  %v1372 = vadd.f32 %v277, %v1371
  %v1373 = vpop.f32.mrf.mxu0
  %v1374 = vadd.f32 %v277, %v1373
  %1375 = vmatmul.bf16.gmra.mxu0 %v959
  %v1376 = vpop.f32.mrf.mxu0
  %v1377 = vadd.f32 %v277, %v1376
  %v1378 = vpop.f32.mrf.mxu0
  %v1379 = vadd.f32 %v277, %v1378
  %1380 = vmatmul.bf16.gmra.mxu0 %v962
  %v1381 = vpop.f32.mrf.mxu0
  %v1382 = vadd.f32 %v277, %v1381
  %v1383 = vpop.f32.mrf.mxu0
  %v1384 = vadd.f32 %v277, %v1383
  %1385 = vmatmul.bf16.gmra.mxu0 %v965
  %v1386 = vpop.f32.mrf.mxu0
  %v1387 = vadd.f32 %v277, %v1386
  %v1388 = vpop.f32.mrf.mxu0
  %v1389 = vadd.f32 %v277, %v1388
  %1390 = vmatmul.bf16.gmra.mxu0 %v968
  %v1391 = vpop.f32.mrf.mxu0
  %v1392 = vadd.f32 %v277, %v1391
  %v1393 = vpop.f32.mrf.mxu0
  %v1394 = vadd.f32 %v277, %v1393
  %1395 = vmatmul.bf16.gmra.mxu0 %v971
  %v1396 = vpop.f32.mrf.mxu0
  %v1397 = vadd.f32 %v277, %v1396
  %v1398 = vpop.f32.mrf.mxu0
  %v1399 = vadd.f32 %v277, %v1398
  %1400 = vmatmul.bf16.gmra.mxu0 %v974
  %v1401 = vpop.f32.mrf.mxu0
  %v1402 = vadd.f32 %v277, %v1401
  %v1403 = vpop.f32.mrf.mxu0
  %v1404 = vadd.f32 %v277, %v1403
  %1405 = vmatmul.bf16.gmra.mxu0 %v977
  %v1406 = vpop.f32.mrf.mxu0
  %v1407 = vadd.f32 %v277, %v1406
  %v1408 = vpop.f32.mrf.mxu0
  %v1409 = vadd.f32 %v277, %v1408
  %1410 = vmatmul.bf16.gmra.mxu0 %v980
  %v1411 = vpop.f32.mrf.mxu0
  %v1412 = vadd.f32 %v277, %v1411
  %v1413 = vpop.f32.mrf.mxu0
  %v1414 = vadd.f32 %v277, %v1413
  %1415 = vmatmul.bf16.gmra.mxu0 %v983
  %v1416 = vpop.f32.mrf.mxu0
  %v1417 = vadd.f32 %v277, %v1416
  %v1418 = vpop.f32.mrf.mxu0
  %v1419 = vadd.f32 %v277, %v1418
  %1420 = vmatmul.bf16.gmra.mxu0 %v986
  %v1421 = vpop.f32.mrf.mxu0
  %v1422 = vadd.f32 %v277, %v1421
  %v1423 = vpop.f32.mrf.mxu0
  %v1424 = vadd.f32 %v277, %v1423
  %1425 = vmatmul.bf16.gmra.mxu0 %v989
  %v1426 = vpop.f32.mrf.mxu0
  %v1427 = vadd.f32 %v277, %v1426
  %v1428 = vpop.f32.mrf.mxu0
  %v1429 = vadd.f32 %v277, %v1428
  %1430 = vmatmul.bf16.gmra.mxu0 %v992
  %v1431 = vpop.f32.mrf.mxu0
  %v1432 = vadd.f32 %v277, %v1431
  %v1433 = vpop.f32.mrf.mxu0
  %v1434 = vadd.f32 %v277, %v1433
  %1435 = vmatmul.bf16.gmra.mxu0 %v995
  %v1436 = vpop.f32.mrf.mxu0
  %v1437 = vadd.f32 %v277, %v1436
  %v1438 = vpop.f32.mrf.mxu0
  %v1439 = vadd.f32 %v277, %v1438
  %1440 = vmatmul.bf16.gmra.mxu0 %v998
  %v1441 = vpop.f32.mrf.mxu0
  %v1442 = vadd.f32 %v277, %v1441
  %v1443 = vpop.f32.mrf.mxu0
  %v1444 = vadd.f32 %v277, %v1443
  %1445 = vmatmul.bf16.gmra.mxu0 %v1001
  %v1446 = vpop.f32.mrf.mxu0
  %v1447 = vadd.f32 %v277, %v1446
  %v1448 = vpop.f32.mrf.mxu0
  %v1449 = vadd.f32 %v277, %v1448
  %1450 = vmatmul.bf16.gmra.mxu0 %v1004
  %v1451 = vpop.f32.mrf.mxu0
  %v1452 = vadd.f32 %v277, %v1451
  %v1453 = vpop.f32.mrf.mxu0
  %v1454 = vadd.f32 %v277, %v1453
  %1455 = vmatmul.bf16.gmra.mxu0 %v1007
  %v1456 = vpop.f32.mrf.mxu0
  %v1457 = vadd.f32 %v277, %v1456
  %v1458 = vpop.f32.mrf.mxu0
  %v1459 = vadd.f32 %v277, %v1458
  %1460 = vmatmul.bf16.gmra.mxu0 %v1010
  %v1461 = vpop.f32.mrf.mxu0
  %v1462 = vadd.f32 %v277, %v1461
  %v1463 = vpop.f32.mrf.mxu0
  %v1464 = vadd.f32 %v277, %v1463
  %1465 = vmatmul.bf16.gmra.mxu0 %v1013
  %v1466 = vpop.f32.mrf.mxu0
  %v1467 = vadd.f32 %v277, %v1466
  %v1468 = vpop.f32.mrf.mxu0
  %v1469 = vadd.f32 %v277, %v1468
  %1470 = vmatmul.bf16.gmra.mxu0 %v1016
  %v1471 = vpop.f32.mrf.mxu0
  %v1472 = vadd.f32 %v277, %v1471
  %v1473 = vpop.f32.mrf.mxu0
  %v1474 = vadd.f32 %v277, %v1473
  %1475 = vmatmul.bf16.gmra.mxu0 %v1019
  %v1476 = vpop.f32.mrf.mxu0
  %v1477 = vadd.f32 %v277, %v1476
  %v1478 = vpop.f32.mrf.mxu0
  %v1479 = vadd.f32 %v277, %v1478
  %1480 = vmatmul.bf16.gmra.mxu0 %v1022
  %v1481 = vpop.f32.mrf.mxu0
  %v1482 = vadd.f32 %v277, %v1481
  %v1483 = vpop.f32.mrf.mxu0
  %v1484 = vadd.f32 %v277, %v1483
  %1485 = vmatmul.bf16.gmra.mxu0 %v1025
  %v1486 = vpop.f32.mrf.mxu0
  %v1487 = vadd.f32 %v277, %v1486
  %v1488 = vpop.f32.mrf.mxu0
  %v1489 = vadd.f32 %v277, %v1488
  %1490 = vmatmul.bf16.gmra.mxu0 %v1028
  %v1491 = vpop.f32.mrf.mxu0
  %v1492 = vadd.f32 %v277, %v1491
  %v1493 = vpop.f32.mrf.mxu0
  %v1494 = vadd.f32 %v277, %v1493
  %1495 = vmatmul.bf16.gmra.mxu0 %v1031
  %v1496 = vpop.f32.mrf.mxu0
  %v1497 = vadd.f32 %v277, %v1496
  %v1498 = vpop.f32.mrf.mxu0
  %v1499 = vadd.f32 %v277, %v1498
  %1500 = vmatmul.bf16.gmra.mxu0 %v1034
  %v1501 = vpop.f32.mrf.mxu0
  %v1502 = vadd.f32 %v277, %v1501
  %v1503 = vpop.f32.mrf.mxu0
  %v1504 = vadd.f32 %v277, %v1503
  %1505 = vmatmul.bf16.gmra.mxu0 %v1037
  %v1506 = vpop.f32.mrf.mxu0
  %v1507 = vadd.f32 %v277, %v1506
  %v1508 = vpop.f32.mrf.mxu0
  %v1509 = vadd.f32 %v277, %v1508
  %1510 = vmatmul.bf16.gmra.mxu0 %v1040
  %v1511 = vpop.f32.mrf.mxu0
  %v1512 = vadd.f32 %v277, %v1511
  %v1513 = vpop.f32.mrf.mxu0
  %v1514 = vadd.f32 %v277, %v1513
  %1515 = vmatmul.bf16.gmra.mxu0 %v1043
  %v1516 = vpop.f32.mrf.mxu0
  %v1517 = vadd.f32 %v277, %v1516
  %v1518 = vpop.f32.mrf.mxu0
  %v1519 = vadd.f32 %v277, %v1518
  %1520 = vmatmul.bf16.gmra.mxu0 %v1046
  %v1521 = vpop.f32.mrf.mxu0
  %v1522 = vadd.f32 %v277, %v1521
  %v1523 = vpop.f32.mrf.mxu0
  %v1524 = vadd.f32 %v277, %v1523
  %1525 = vmatmul.bf16.gmra.mxu0 %v1049
  %v1526 = vpop.f32.mrf.mxu0
  %v1527 = vadd.f32 %v277, %v1526
  %v1528 = vpop.f32.mrf.mxu0
  %v1529 = vadd.f32 %v277, %v1528
  %1530 = vmatmul.bf16.gmra.mxu0 %v1052
  %v1531 = vpop.f32.mrf.mxu0
  %v1532 = vadd.f32 %v277, %v1531
  %v1533 = vpop.f32.mrf.mxu0
  %v1534 = vadd.f32 %v277, %v1533
  %1535 = vmatmul.bf16.gmra.mxu0 %v1055
  %v1536 = vpop.f32.mrf.mxu0
  %v1537 = vadd.f32 %v277, %v1536
  %v1538 = vpop.f32.mrf.mxu0
  %v1539 = vadd.f32 %v277, %v1538
  %1540 = vmatmul.bf16.gmra.mxu0 %v1058
  %v1541 = vpop.f32.mrf.mxu0
  %v1542 = vadd.f32 %v277, %v1541
  %v1543 = vpop.f32.mrf.mxu0
  %v1544 = vadd.f32 %v277, %v1543
  %1545 = vmatmul.bf16.gmra.mxu0 %v1061
  %v1546 = vpop.f32.mrf.mxu0
  %v1547 = vadd.f32 %v277, %v1546
  %v1548 = vpop.f32.mrf.mxu0
  %v1549 = vadd.f32 %v277, %v1548
  %1550 = vmatmul.bf16.gmra.mxu0 %v1064
  %v1551 = vpop.f32.mrf.mxu0
  %v1552 = vadd.f32 %v277, %v1551
  %v1553 = vpop.f32.mrf.mxu0
  %v1554 = vadd.f32 %v277, %v1553
  %1555 = vmatmul.bf16.gmra.mxu0 %v1067
  %v1556 = vpop.f32.mrf.mxu0
  %v1557 = vadd.f32 %v277, %v1556
  %v1558 = vpop.f32.mrf.mxu0
  %v1559 = vadd.f32 %v277, %v1558
  %1560 = vmatmul.bf16.gmra.mxu0 %v1070
  %v1561 = vpop.f32.mrf.mxu0
  %v1562 = vadd.f32 %v277, %v1561
  %v1563 = vpop.f32.mrf.mxu0
  %v1564 = vadd.f32 %v277, %v1563
  %1565 = vmatmul.bf16.gmra.mxu0 %v1073
  %v1566 = vpop.f32.mrf.mxu0
  %v1567 = vadd.f32 %v277, %v1566
  %v1568 = vpop.f32.mrf.mxu0
  %v1569 = vadd.f32 %v277, %v1568
  %1570 = vmatmul.bf16.gmra.mxu0 %v1076
  %v1571 = vpop.f32.mrf.mxu0
  %v1572 = vadd.f32 %v277, %v1571
  %v1573 = vpop.f32.mrf.mxu0
  %v1574 = vadd.f32 %v277, %v1573
  %1575 = vmatmul.bf16.gmra.mxu0 %v1079
  %v1576 = vpop.f32.mrf.mxu0
  %v1577 = vadd.f32 %v277, %v1576
  %v1578 = vpop.f32.mrf.mxu0
  %v1579 = vadd.f32 %v277, %v1578
  %1580 = vmatmul.bf16.gmra.mxu0 %v1082
  %v1581 = vpop.f32.mrf.mxu0
  %v1582 = vadd.f32 %v277, %v1581
  %v1583 = vpop.f32.mrf.mxu0
  %v1584 = vadd.f32 %v277, %v1583
  %1585 = vmatmul.bf16.gmra.mxu0 %v1085
  %v1586 = vpop.f32.mrf.mxu0
  %v1587 = vadd.f32 %v277, %v1586
  %v1588 = vpop.f32.mrf.mxu0
  %v1589 = vadd.f32 %v277, %v1588
  %1590 = vmatmul.bf16.gmra.mxu0 %v1088
  %v1591 = vpop.f32.mrf.mxu0
  %v1592 = vadd.f32 %v277, %v1591
  %v1593 = vpop.f32.mrf.mxu0
  %v1594 = vadd.f32 %v277, %v1593
  %1595 = vmatmul.bf16.gmra.mxu0 %v1091
  %v1596 = vpop.f32.mrf.mxu0
  %v1597 = vadd.f32 %v277, %v1596
  %v1598 = vpop.f32.mrf.mxu0
  %v1599 = vadd.f32 %v277, %v1598
  %1600 = vmatmul.bf16.gmra.mxu0 %v1094
  %v1601 = vpop.f32.mrf.mxu0
  %v1602 = vadd.f32 %v277, %v1601
  %v1603 = vpop.f32.mrf.mxu0
  %v1604 = vadd.f32 %v277, %v1603
  %1605 = vmatmul.bf16.gmra.mxu0 %v1097
  %v1606 = vpop.f32.mrf.mxu0
  %v1607 = vadd.f32 %v277, %v1606
  %v1608 = vpop.f32.mrf.mxu0
  %v1609 = vadd.f32 %v277, %v1608
  %1610 = vmatmul.bf16.gmra.mxu0 %v1100
  %v1611 = vpop.f32.mrf.mxu0
  %v1612 = vadd.f32 %v277, %v1611
  %v1613 = vpop.f32.mrf.mxu0
  %v1614 = vadd.f32 %v277, %v1613
  %1615 = vmatmul.bf16.gmra.mxu0 %v1103
  %v1616 = vpop.f32.mrf.mxu0
  %v1617 = vadd.f32 %v277, %v1616
  %v1618 = vpop.f32.mrf.mxu0
  %v1619 = vadd.f32 %v277, %v1618
  %1620 = vmatmul.bf16.gmra.mxu0 %v1106
  %v1621 = vpop.f32.mrf.mxu0
  %v1622 = vadd.f32 %v277, %v1621
  %v1623 = vpop.f32.mrf.mxu0
  %v1624 = vadd.f32 %v277, %v1623
  %1625 = vmatmul.bf16.gmra.mxu0 %v1109
  %v1626 = vpop.f32.mrf.mxu0
  %v1627 = vadd.f32 %v277, %v1626
  %v1628 = vpop.f32.mrf.mxu0
  %v1629 = vadd.f32 %v277, %v1628
  %1630 = vmatmul.bf16.gmra.mxu0 %v1112
  %v1631 = vpop.f32.mrf.mxu0
  %v1632 = vadd.f32 %v277, %v1631
  %v1633 = vpop.f32.mrf.mxu0
  %v1634 = vadd.f32 %v277, %v1633
  %1635 = vmatmul.bf16.gmra.mxu0 %v1115
  %v1636 = vpop.f32.mrf.mxu0
  %v1637 = vadd.f32 %v277, %v1636
  %v1638 = vpop.f32.mrf.mxu0
  %v1639 = vadd.f32 %v277, %v1638
  %1640 = vmatmul.bf16.gmra.mxu0 %v1118
  %v1641 = vpop.f32.mrf.mxu0
  %v1642 = vadd.f32 %v277, %v1641
  %v1643 = vpop.f32.mrf.mxu0
  %v1644 = vadd.f32 %v277, %v1643
  %1645 = vmatmul.bf16.gmra.mxu0 %v1121
  %v1646 = vpop.f32.mrf.mxu0
  %v1647 = vadd.f32 %v277, %v1646
  %v1648 = vpop.f32.mrf.mxu0
  %v1649 = vadd.f32 %v277, %v1648
  %1650 = vmatmul.bf16.gmra.mxu0 %v1124
  %v1651 = vpop.f32.mrf.mxu0
  %v1652 = vadd.f32 %v277, %v1651
  %v1653 = vpop.f32.mrf.mxu0
  %v1654 = vadd.f32 %v277, %v1653
  %1655 = vmatmul.bf16.gmra.mxu0 %v1127
  %v1656 = vpop.f32.mrf.mxu0
  %v1657 = vadd.f32 %v277, %v1656
  %v1658 = vpop.f32.mrf.mxu0
  %v1659 = vadd.f32 %v277, %v1658
  %1660 = vmatmul.bf16.gmra.mxu0 %v1130
  %v1661 = vpop.f32.mrf.mxu0
  %v1662 = vadd.f32 %v277, %v1661
  %v1663 = vpop.f32.mrf.mxu0
  %v1664 = vadd.f32 %v277, %v1663
  %1665 = vmatmul.bf16.gmra.mxu0 %v1133
  %v1666 = vpop.f32.mrf.mxu0
  %v1667 = vadd.f32 %v277, %v1666
  %v1668 = vpop.f32.mrf.mxu0
  %v1669 = vadd.f32 %v277, %v1668
  %1670 = vmatmul.bf16.gmra.mxu0 %v1136
  %v1671 = vpop.f32.mrf.mxu0
  %v1672 = vadd.f32 %v277, %v1671
  %v1673 = vpop.f32.mrf.mxu0
  %v1674 = vadd.f32 %v277, %v1673
  %1675 = vmatmul.bf16.gmra.mxu0 %v1139
  %v1676 = vpop.f32.mrf.mxu0
  %v1677 = vadd.f32 %v277, %v1676
  %v1678 = vpop.f32.mrf.mxu0
  %v1679 = vadd.f32 %v277, %v1678
  %1680 = vmatmul.bf16.gmra.mxu0 %v1142
  %v1681 = vpop.f32.mrf.mxu0
  %v1682 = vadd.f32 %v277, %v1681
  %v1683 = vpop.f32.mrf.mxu0
  %v1684 = vadd.f32 %v277, %v1683
  %1685 = vmatmul.bf16.gmra.mxu0 %v1145
  %v1686 = vpop.f32.mrf.mxu0
  %v1687 = vadd.f32 %v277, %v1686
  %v1688 = vpop.f32.mrf.mxu0
  %v1689 = vadd.f32 %v277, %v1688
  %1690 = vmatmul.bf16.gmra.mxu0 %v1148
  %v1691 = vpop.f32.mrf.mxu0
  %v1692 = vadd.f32 %v277, %v1691
  %v1693 = vpop.f32.mrf.mxu0
  %v1694 = vadd.f32 %v277, %v1693
  %1695 = vmatmul.bf16.gmra.mxu0 %v1151
  %v1696 = vpop.f32.mrf.mxu0
  %v1697 = vadd.f32 %v277, %v1696
  %v1698 = vpop.f32.mrf.mxu0
  %v1699 = vadd.f32 %v277, %v1698
  %1700 = vmatmul.bf16.gmra.mxu0 %v1154
  %v1701 = vpop.f32.mrf.mxu0
  %v1702 = vadd.f32 %v277, %v1701
  %v1703 = vpop.f32.mrf.mxu0
  %v1704 = vadd.f32 %v277, %v1703
  %1705 = vmatmul.bf16.gmra.mxu0 %v1157
  %v1706 = vpop.f32.mrf.mxu0
  %v1707 = vadd.f32 %v277, %v1706
  %v1708 = vpop.f32.mrf.mxu0
  %v1709 = vadd.f32 %v277, %v1708
  %1710 = vmatmul.bf16.gmra.mxu0 %v1160
  %v1711 = vpop.f32.mrf.mxu0
  %v1712 = vadd.f32 %v277, %v1711
  %v1713 = vpop.f32.mrf.mxu0
  %v1714 = vadd.f32 %v277, %v1713
  %1715 = vmatmul.bf16.gmra.mxu0 %v1163
  %v1716 = vpop.f32.mrf.mxu0
  %v1717 = vadd.f32 %v277, %v1716
  %v1718 = vpop.f32.mrf.mxu0
  %v1719 = vadd.f32 %v277, %v1718
  %1720 = vmatmul.bf16.gmra.mxu0 %v1166
  %v1721 = vpop.f32.mrf.mxu0
  %v1722 = vadd.f32 %v277, %v1721
  %v1723 = vpop.f32.mrf.mxu0
  %v1724 = vadd.f32 %v277, %v1723
  %1725 = vmatmul.bf16.gmra.mxu0 %v1169
  %v1726 = vpop.f32.mrf.mxu0
  %v1727 = vadd.f32 %v277, %v1726
  %v1728 = vpop.f32.mrf.mxu0
  %v1729 = vadd.f32 %v277, %v1728
  %1730 = vmatmul.bf16.gmra.mxu0 %v1172
  %v1731 = vpop.f32.mrf.mxu0
  %v1732 = vadd.f32 %v277, %v1731
  %v1733 = vpop.f32.mrf.mxu0
  %v1734 = vadd.f32 %v277, %v1733
  %1735 = vmatmul.bf16.gmra.mxu0 %v1175
  %v1736 = vpop.f32.mrf.mxu0
  %v1737 = vadd.f32 %v277, %v1736
  %v1738 = vpop.f32.mrf.mxu0
  %v1739 = vadd.f32 %v277, %v1738
  %1740 = vmatmul.bf16.gmra.mxu0 %v1178
  %v1741 = vpop.f32.mrf.mxu0
  %v1742 = vadd.f32 %v277, %v1741
  %v1743 = vpop.f32.mrf.mxu0
  %v1744 = vadd.f32 %v277, %v1743
  %1745 = vmatmul.bf16.gmra.mxu0 %v1181
  %v1746 = vpop.f32.mrf.mxu0
  %v1747 = vadd.f32 %v277, %v1746
  %v1748 = vpop.f32.mrf.mxu0
  %v1749 = vadd.f32 %v277, %v1748
  %1750 = vmatmul.bf16.gmra.mxu0 %v1184
  %v1751 = vpop.f32.mrf.mxu0
  %v1752 = vadd.f32 %v277, %v1751
  %v1753 = vpop.f32.mrf.mxu0
  %v1754 = vadd.f32 %v277, %v1753
  %1755 = vmatmul.bf16.gmra.mxu0 %v1187
  %v1756 = vpop.f32.mrf.mxu0
  %v1757 = vadd.f32 %v277, %v1756
  %v1758 = vpop.f32.mrf.mxu0
  %v1759 = vadd.f32 %v277, %v1758
  %1760 = vmatmul.bf16.gmra.mxu0 %v1190
  %v1761 = vpop.f32.mrf.mxu0
  %v1762 = vadd.f32 %v277, %v1761
  %v1763 = vpop.f32.mrf.mxu0
  %v1764 = vadd.f32 %v277, %v1763
  %1765 = vmatmul.bf16.gmra.mxu0 %v1193
  %v1766 = vpop.f32.mrf.mxu0
  %v1767 = vadd.f32 %v277, %v1766
  %v1768 = vpop.f32.mrf.mxu0
  %v1769 = vadd.f32 %v277, %v1768
  %1770 = vmatmul.bf16.gmra.mxu0 %v1196
  %v1771 = vpop.f32.mrf.mxu0
  %v1772 = vadd.f32 %v277, %v1771
  %v1773 = vpop.f32.mrf.mxu0
  %v1774 = vadd.f32 %v277, %v1773
  %1775 = vmatmul.bf16.gmra.mxu0 %v1199
  %v1776 = vpop.f32.mrf.mxu0
  %v1777 = vadd.f32 %v277, %v1776
  %v1778 = vpop.f32.mrf.mxu0
  %v1779 = vadd.f32 %v277, %v1778
  %1780 = vmatmul.bf16.gmra.mxu0 %v1202
  %v1781 = vpop.f32.mrf.mxu0
  %v1782 = vadd.f32 %v277, %v1781
  %v1783 = vpop.f32.mrf.mxu0
  %v1784 = vadd.f32 %v277, %v1783
  %1785 = vmatmul.bf16.gmra.mxu0 %v1205
  %v1786 = vpop.f32.mrf.mxu0
  %v1787 = vadd.f32 %v277, %v1786
  %v1788 = vpop.f32.mrf.mxu0
  %v1789 = vadd.f32 %v277, %v1788
  %1790 = vmatmul.bf16.gmra.mxu0 %v1208
  %v1791 = vpop.f32.mrf.mxu0
  %v1792 = vadd.f32 %v277, %v1791
  %v1793 = vpop.f32.mrf.mxu0
  %v1794 = vadd.f32 %v277, %v1793
  %1795 = vmatmul.bf16.gmra.mxu0 %v1211
  %v1796 = vpop.f32.mrf.mxu0
  %v1797 = vadd.f32 %v277, %v1796
  %v1798 = vpop.f32.mrf.mxu0
  %v1799 = vadd.f32 %v277, %v1798
  %1800 = vmatmul.bf16.gmra.mxu0 %v1214
  %v1801 = vpop.f32.mrf.mxu0
  %v1802 = vadd.f32 %v277, %v1801
  %v1803 = vpop.f32.mrf.mxu0
  %v1804 = vadd.f32 %v277, %v1803
  %1805 = vmatmul.bf16.gmra.mxu0 %v1217
  %v1806 = vpop.f32.mrf.mxu0
  %v1807 = vadd.f32 %v277, %v1806
  %v1808 = vpop.f32.mrf.mxu0
  %v1809 = vadd.f32 %v277, %v1808
  %1810 = vmatmul.bf16.gmra.mxu0 %v1220
  %v1811 = vpop.f32.mrf.mxu0
  %v1812 = vadd.f32 %v277, %v1811
  %v1813 = vpop.f32.mrf.mxu0
  %v1814 = vadd.f32 %v277, %v1813
  %1815 = vmatmul.bf16.gmra.mxu0 %v1223
  %v1816 = vpop.f32.mrf.mxu0
  %v1817 = vadd.f32 %v277, %v1816
  %v1818 = vpop.f32.mrf.mxu0
  %v1819 = vadd.f32 %v277, %v1818
  %1820 = vmatmul.bf16.gmra.mxu0 %v1226
  %v1821 = vpop.f32.mrf.mxu0
  %v1822 = vadd.f32 %v277, %v1821
  %v1823 = vpop.f32.mrf.mxu0
  %v1824 = vadd.f32 %v277, %v1823
  %1825 = vmatmul.bf16.gmra.mxu0 %v1229
  %v1826 = vpop.f32.mrf.mxu0
  %v1827 = vadd.f32 %v277, %v1826
  %v1828 = vpop.f32.mrf.mxu0
  %v1829 = vadd.f32 %v277, %v1828
  %1830 = vmatmul.bf16.gmra.mxu0 %v1232
  %v1831 = vpop.f32.mrf.mxu0
  %v1832 = vadd.f32 %v277, %v1831
  %v1833 = vpop.f32.mrf.mxu0
  %v1834 = vadd.f32 %v277, %v1833
  %1835 = vmatmul.bf16.gmra.mxu0 %v1235
  %v1836 = vpop.f32.mrf.mxu0
  %v1837 = vadd.f32 %v277, %v1836
  %v1838 = vpop.f32.mrf.mxu0
  %v1839 = vadd.f32 %v277, %v1838
  %1840 = vmatmul.bf16.gmra.mxu0 %v1238
  %v1841 = vpop.f32.mrf.mxu0
  %v1842 = vadd.f32 %v277, %v1841
  %v1843 = vpop.f32.mrf.mxu0
  %v1844 = vadd.f32 %v277, %v1843
  %1845 = vmatmul.bf16.gmra.mxu0 %v1241
  %v1846 = vpop.f32.mrf.mxu0
  %v1847 = vadd.f32 %v277, %v1846
  %v1848 = vpop.f32.mrf.mxu0
  %v1849 = vadd.f32 %v277, %v1848
  %1850 = vmatmul.bf16.gmra.mxu0 %v1244
  %v1851 = vpop.f32.mrf.mxu0
  %v1852 = vadd.f32 %v277, %v1851
  %v1853 = vpop.f32.mrf.mxu0
  %v1854 = vadd.f32 %v277, %v1853
  %1855 = vmatmul.bf16.gmra.mxu0 %v1247
  %v1856 = vpop.f32.mrf.mxu0
  %v1857 = vadd.f32 %v277, %v1856
  %v1858 = vpop.f32.mrf.mxu0
  %v1859 = vadd.f32 %v277, %v1858
  %1860 = vmatmul.bf16.gmra.mxu0 %v1250
  %v1861 = vpop.f32.mrf.mxu0
  %v1862 = vadd.f32 %v277, %v1861
  %v1863 = vpop.f32.mrf.mxu0
  %v1864 = vadd.f32 %v277, %v1863
  %1865 = vmatmul.bf16.gmra.mxu0 %v1253
  %v1866 = vpop.f32.mrf.mxu0
  %v1867 = vadd.f32 %v277, %v1866
  %v1868 = vpop.f32.mrf.mxu0
  %v1869 = vadd.f32 %v277, %v1868
  %1870 = vmatmul.bf16.gmra.mxu0 %v1256
  %v1871 = vpop.f32.mrf.mxu0
  %v1872 = vadd.f32 %v277, %v1871
  %v1873 = vpop.f32.mrf.mxu0
  %v1874 = vadd.f32 %v277, %v1873
  %1875 = vmatmul.bf16.gmra.mxu0 %v1259
  %v1876 = vpop.f32.mrf.mxu0
  %v1877 = vadd.f32 %v277, %v1876
  %v1878 = vpop.f32.mrf.mxu0
  %v1879 = vadd.f32 %v277, %v1878
  %1880 = vmatmul.bf16.gmra.mxu0 %v1262
  %v1881 = vpop.f32.mrf.mxu0
  %v1882 = vadd.f32 %v277, %v1881
  %v1883 = vpop.f32.mrf.mxu0
  %v1884 = vadd.f32 %v277, %v1883
  %1885 = vmatmul.bf16.gmra.mxu0 %v1265
  %v1886 = vpop.f32.mrf.mxu0
  %v1887 = vadd.f32 %v277, %v1886
  %v1888 = vpop.f32.mrf.mxu0
  %v1889 = vadd.f32 %v277, %v1888
  %1890 = vmatmul.bf16.gmra.mxu0 %v1268
  %v1891 = vpop.f32.mrf.mxu0
  %v1892 = vadd.f32 %v277, %v1891
  %v1893 = vpop.f32.mrf.mxu0
  %v1894 = vadd.f32 %v277, %v1893
  %1895 = vmatmul.bf16.gmra.mxu0 %v1271
  %v1896 = vpop.f32.mrf.mxu0
  %v1897 = vadd.f32 %v277, %v1896
  %v1898 = vpop.f32.mrf.mxu0
  %v1899 = vadd.f32 %v277, %v1898
  %1900 = vmatmul.bf16.gmra.mxu0 %v1274
  %v1901 = vpop.f32.mrf.mxu0
  %v1902 = vadd.f32 %v277, %v1901
  %v1903 = vpop.f32.mrf.mxu0
  %v1904 = vadd.f32 %v277, %v1903
  %1905 = vmatmul.bf16.gmra.mxu0 %v1277
  %v1906 = vpop.f32.mrf.mxu0
  %v1907 = vadd.f32 %v277, %v1906
  %v1908 = vpop.f32.mrf.mxu0
  %v1909 = vadd.f32 %v277, %v1908
  %1910 = vmatmul.bf16.gmra.mxu0 %v1280
  %v1911 = vpop.f32.mrf.mxu0
  %v1912 = vadd.f32 %v277, %v1911
  %v1913 = vpop.f32.mrf.mxu0
  %v1914 = vadd.f32 %v277, %v1913
  %1915 = vmatmul.bf16.gmra.mxu0 %v1283
  %v1916 = vpop.f32.mrf.mxu0
  %v1917 = vadd.f32 %v277, %v1916
  %v1918 = vpop.f32.mrf.mxu0
  %v1919 = vadd.f32 %v277, %v1918
  %1920 = vmatmul.bf16.gmra.mxu0 %v1286
  %v1921 = vpop.f32.mrf.mxu0
  %v1922 = vadd.f32 %v277, %v1921
  %v1923 = vpop.f32.mrf.mxu0
  %v1924 = vadd.f32 %v277, %v1923
  %1925 = vmatmul.bf16.gmra.mxu0 %v1289
  %v1926 = vpop.f32.mrf.mxu0
  %v1927 = vadd.f32 %v277, %v1926
  %v1928 = vpop.f32.mrf.mxu0
  %v1929 = vadd.f32 %v277, %v1928
  %1930 = vmatmul.bf16.gmra.mxu0 %v1292
  %v1931 = vpop.f32.mrf.mxu0
  %v1932 = vadd.f32 %v277, %v1931
  %v1933 = vpop.f32.mrf.mxu0
  %v1934 = vadd.f32 %v277, %v1933
  %1935 = vmatmul.bf16.gmra.mxu0 %v1295
  %v1936 = vpop.f32.mrf.mxu0
  %v1937 = vadd.f32 %v277, %v1936
  %v1938 = vpop.f32.mrf.mxu0
  %v1939 = vadd.f32 %v277, %v1938
  %1940 = vmatmul.bf16.gmra.mxu0 %v1298
  %v1941 = vpop.f32.mrf.mxu0
  %v1942 = vadd.f32 %v277, %v1941
  %v1943 = vpop.f32.mrf.mxu0
  %v1944 = vadd.f32 %v277, %v1943
  %1945 = vmatmul.bf16.gmra.mxu0 %v1301
  %v1946 = vpop.f32.mrf.mxu0
  %v1947 = vadd.f32 %v277, %v1946
  %v1948 = vpop.f32.mrf.mxu0
  %v1949 = vadd.f32 %v277, %v1948
  %1950 = vmatmul.bf16.gmra.mxu0 %v1304
  %v1951 = vpop.f32.mrf.mxu0
  %v1952 = vadd.f32 %v277, %v1951
  %v1953 = vpop.f32.mrf.mxu0
  %v1954 = vadd.f32 %v277, %v1953
  %1955 = vmatmul.bf16.gmra.mxu0 %v1307
  %v1956 = vpop.f32.mrf.mxu0
  %v1957 = vadd.f32 %v277, %v1956
  %v1958 = vpop.f32.mrf.mxu0
  %v1959 = vadd.f32 %v277, %v1958
  %1960 = vmatmul.bf16.gmra.mxu0 %v1310
  %v1961 = vpop.f32.mrf.mxu0
  %v1962 = vadd.f32 %v277, %v1961
  %v1963 = vpop.f32.mrf.mxu0
  %v1964 = vadd.f32 %v277, %v1963
  %1965 = vmatmul.bf16.gmra.mxu0 %v1313
  %v1966 = vpop.f32.mrf.mxu0
  %v1967 = vadd.f32 %v277, %v1966
  %v1968 = vpop.f32.mrf.mxu0
  %v1969 = vadd.f32 %v277, %v1968
  %1970 = vdwg.mxu0
  %v1971 = vmax.f32 %v1332, 0.0
  %v1972 = vmax.f32 %v1334, 0.0
  %v1973 = vmax.f32 %v1337, 0.0
  %v1974 = vmax.f32 %v1339, 0.0
  %v1975 = vmax.f32 %v1342, 0.0
  %v1976 = vmax.f32 %v1344, 0.0
  %v1977 = vmax.f32 %v1347, 0.0
  %v1978 = vmax.f32 %v1349, 0.0
  %v1979 = vmax.f32 %v1352, 0.0
  %v1980 = vmax.f32 %v1354, 0.0
  %v1981 = vmax.f32 %v1357, 0.0
  %v1982 = vmax.f32 %v1359, 0.0
  %v1983 = vmax.f32 %v1362, 0.0
  %v1984 = vmax.f32 %v1364, 0.0
  %v1985 = vmax.f32 %v1367, 0.0
  %v1986 = vmax.f32 %v1369, 0.0
  %v1987 = vmax.f32 %v1372, 0.0
  %v1988 = vmax.f32 %v1374, 0.0
  %v1989 = vmax.f32 %v1377, 0.0
  %v1990 = vmax.f32 %v1379, 0.0
  %v1991 = vmax.f32 %v1382, 0.0
  %v1992 = vmax.f32 %v1384, 0.0
  %v1993 = vmax.f32 %v1387, 0.0
  %v1994 = vmax.f32 %v1389, 0.0
  %v1995 = vmax.f32 %v1392, 0.0
  %v1996 = vmax.f32 %v1394, 0.0
  %v1997 = vmax.f32 %v1397, 0.0
  %v1998 = vmax.f32 %v1399, 0.0
  %v1999 = vmax.f32 %v1402, 0.0
  %v2000 = vmax.f32 %v1404, 0.0
  %v2001 = vmax.f32 %v1407, 0.0
  %v2002 = vmax.f32 %v1409, 0.0
  %v2003 = vmax.f32 %v1412, 0.0
  %v2004 = vmax.f32 %v1414, 0.0
  %v2005 = vmax.f32 %v1417, 0.0
  %v2006 = vmax.f32 %v1419, 0.0
  %v2007 = vmax.f32 %v1422, 0.0
  %v2008 = vmax.f32 %v1424, 0.0
  %v2009 = vmax.f32 %v1427, 0.0
  %v2010 = vmax.f32 %v1429, 0.0
  %v2011 = vmax.f32 %v1432, 0.0
  %v2012 = vmax.f32 %v1434, 0.0
  %v2013 = vmax.f32 %v1437, 0.0
  %v2014 = vmax.f32 %v1439, 0.0
  %v2015 = vmax.f32 %v1442, 0.0
  %v2016 = vmax.f32 %v1444, 0.0
  %v2017 = vmax.f32 %v1447, 0.0
  %v2018 = vmax.f32 %v1449, 0.0
  %v2019 = vmax.f32 %v1452, 0.0
  %v2020 = vmax.f32 %v1454, 0.0
  %v2021 = vmax.f32 %v1457, 0.0
  %v2022 = vmax.f32 %v1459, 0.0
  %v2023 = vmax.f32 %v1462, 0.0
  %v2024 = vmax.f32 %v1464, 0.0
  %v2025 = vmax.f32 %v1467, 0.0
  %v2026 = vmax.f32 %v1469, 0.0
  %v2027 = vmax.f32 %v1472, 0.0
  %v2028 = vmax.f32 %v1474, 0.0
  %v2029 = vmax.f32 %v1477, 0.0
  %v2030 = vmax.f32 %v1479, 0.0
  %v2031 = vmax.f32 %v1482, 0.0
  %v2032 = vmax.f32 %v1484, 0.0
  %v2033 = vmax.f32 %v1487, 0.0
  %v2034 = vmax.f32 %v1489, 0.0
  %v2035 = vmax.f32 %v1492, 0.0
  %v2036 = vmax.f32 %v1494, 0.0
  %v2037 = vmax.f32 %v1497, 0.0
  %v2038 = vmax.f32 %v1499, 0.0
  %v2039 = vmax.f32 %v1502, 0.0
  %v2040 = vmax.f32 %v1504, 0.0
  %v2041 = vmax.f32 %v1507, 0.0
  %v2042 = vmax.f32 %v1509, 0.0
  %v2043 = vmax.f32 %v1512, 0.0
  %v2044 = vmax.f32 %v1514, 0.0
  %v2045 = vmax.f32 %v1517, 0.0
  %v2046 = vmax.f32 %v1519, 0.0
  %v2047 = vmax.f32 %v1522, 0.0
  %v2048 = vmax.f32 %v1524, 0.0
  %v2049 = vmax.f32 %v1527, 0.0
  %v2050 = vmax.f32 %v1529, 0.0
  %v2051 = vmax.f32 %v1532, 0.0
  %v2052 = vmax.f32 %v1534, 0.0
  %v2053 = vmax.f32 %v1537, 0.0
  %v2054 = vmax.f32 %v1539, 0.0
  %v2055 = vmax.f32 %v1542, 0.0
  %v2056 = vmax.f32 %v1544, 0.0
  %v2057 = vmax.f32 %v1547, 0.0
  %v2058 = vmax.f32 %v1549, 0.0
  %v2059 = vmax.f32 %v1552, 0.0
  %v2060 = vmax.f32 %v1554, 0.0
  %v2061 = vmax.f32 %v1557, 0.0
  %v2062 = vmax.f32 %v1559, 0.0
  %v2063 = vmax.f32 %v1562, 0.0
  %v2064 = vmax.f32 %v1564, 0.0
  %v2065 = vmax.f32 %v1567, 0.0
  %v2066 = vmax.f32 %v1569, 0.0
  %v2067 = vmax.f32 %v1572, 0.0
  %v2068 = vmax.f32 %v1574, 0.0
  %v2069 = vmax.f32 %v1577, 0.0
  %v2070 = vmax.f32 %v1579, 0.0
  %v2071 = vmax.f32 %v1582, 0.0
  %v2072 = vmax.f32 %v1584, 0.0
  %v2073 = vmax.f32 %v1587, 0.0
  %v2074 = vmax.f32 %v1589, 0.0
  %v2075 = vmax.f32 %v1592, 0.0
  %v2076 = vmax.f32 %v1594, 0.0
  %v2077 = vmax.f32 %v1597, 0.0
  %v2078 = vmax.f32 %v1599, 0.0
  %v2079 = vmax.f32 %v1602, 0.0
  %v2080 = vmax.f32 %v1604, 0.0
  %v2081 = vmax.f32 %v1607, 0.0
  %v2082 = vmax.f32 %v1609, 0.0
  %v2083 = vmax.f32 %v1612, 0.0
  %v2084 = vmax.f32 %v1614, 0.0
  %v2085 = vmax.f32 %v1617, 0.0
  %v2086 = vmax.f32 %v1619, 0.0
  %v2087 = vmax.f32 %v1622, 0.0
  %v2088 = vmax.f32 %v1624, 0.0
  %v2089 = vmax.f32 %v1627, 0.0
  %v2090 = vmax.f32 %v1629, 0.0
  %v2091 = vmax.f32 %v1632, 0.0
  %v2092 = vmax.f32 %v1634, 0.0
  %v2093 = vmax.f32 %v1637, 0.0
  %v2094 = vmax.f32 %v1639, 0.0
  %v2095 = vmax.f32 %v1642, 0.0
  %v2096 = vmax.f32 %v1644, 0.0
  %v2097 = vmax.f32 %v1647, 0.0
  %v2098 = vmax.f32 %v1649, 0.0
  %v2099 = vmax.f32 %v1652, 0.0
  %v2100 = vmax.f32 %v1654, 0.0
  %v2101 = vmax.f32 %v1657, 0.0
  %v2102 = vmax.f32 %v1659, 0.0
  %v2103 = vmax.f32 %v1662, 0.0
  %v2104 = vmax.f32 %v1664, 0.0
  %v2105 = vmax.f32 %v1667, 0.0
  %v2106 = vmax.f32 %v1669, 0.0
  %v2107 = vmax.f32 %v1672, 0.0
  %v2108 = vmax.f32 %v1674, 0.0
  %v2109 = vmax.f32 %v1677, 0.0
  %v2110 = vmax.f32 %v1679, 0.0
  %v2111 = vmax.f32 %v1682, 0.0
  %v2112 = vmax.f32 %v1684, 0.0
  %v2113 = vmax.f32 %v1687, 0.0
  %v2114 = vmax.f32 %v1689, 0.0
  %v2115 = vmax.f32 %v1692, 0.0
  %v2116 = vmax.f32 %v1694, 0.0
  %v2117 = vmax.f32 %v1697, 0.0
  %v2118 = vmax.f32 %v1699, 0.0
  %v2119 = vmax.f32 %v1702, 0.0
  %v2120 = vmax.f32 %v1704, 0.0
  %v2121 = vmax.f32 %v1707, 0.0
  %v2122 = vmax.f32 %v1709, 0.0
  %v2123 = vmax.f32 %v1712, 0.0
  %v2124 = vmax.f32 %v1714, 0.0
  %v2125 = vmax.f32 %v1717, 0.0
  %v2126 = vmax.f32 %v1719, 0.0
  %v2127 = vmax.f32 %v1722, 0.0
  %v2128 = vmax.f32 %v1724, 0.0
  %v2129 = vmax.f32 %v1727, 0.0
  %v2130 = vmax.f32 %v1729, 0.0
  %v2131 = vmax.f32 %v1732, 0.0
  %v2132 = vmax.f32 %v1734, 0.0
  %v2133 = vmax.f32 %v1737, 0.0
  %v2134 = vmax.f32 %v1739, 0.0
  %v2135 = vmax.f32 %v1742, 0.0
  %v2136 = vmax.f32 %v1744, 0.0
  %v2137 = vmax.f32 %v1747, 0.0
  %v2138 = vmax.f32 %v1749, 0.0
  %v2139 = vmax.f32 %v1752, 0.0
  %v2140 = vmax.f32 %v1754, 0.0
  %v2141 = vmax.f32 %v1757, 0.0
  %v2142 = vmax.f32 %v1759, 0.0
  %v2143 = vmax.f32 %v1762, 0.0
  %v2144 = vmax.f32 %v1764, 0.0
  %v2145 = vmax.f32 %v1767, 0.0
  %v2146 = vmax.f32 %v1769, 0.0
  %v2147 = vmax.f32 %v1772, 0.0
  %v2148 = vmax.f32 %v1774, 0.0
  %v2149 = vmax.f32 %v1777, 0.0
  %v2150 = vmax.f32 %v1779, 0.0
  %v2151 = vmax.f32 %v1782, 0.0
  %v2152 = vmax.f32 %v1784, 0.0
  %v2153 = vmax.f32 %v1787, 0.0
  %v2154 = vmax.f32 %v1789, 0.0
  %v2155 = vmax.f32 %v1792, 0.0
  %v2156 = vmax.f32 %v1794, 0.0
  %v2157 = vmax.f32 %v1797, 0.0
  %v2158 = vmax.f32 %v1799, 0.0
  %v2159 = vmax.f32 %v1802, 0.0
  %v2160 = vmax.f32 %v1804, 0.0
  %v2161 = vmax.f32 %v1807, 0.0
  %v2162 = vmax.f32 %v1809, 0.0
  %v2163 = vmax.f32 %v1812, 0.0
  %v2164 = vmax.f32 %v1814, 0.0
  %v2165 = vmax.f32 %v1817, 0.0
  %v2166 = vmax.f32 %v1819, 0.0
  %v2167 = vmax.f32 %v1822, 0.0
  %v2168 = vmax.f32 %v1824, 0.0
  %v2169 = vmax.f32 %v1827, 0.0
  %v2170 = vmax.f32 %v1829, 0.0
  %v2171 = vmax.f32 %v1832, 0.0
  %v2172 = vmax.f32 %v1834, 0.0
  %v2173 = vmax.f32 %v1837, 0.0
  %v2174 = vmax.f32 %v1839, 0.0
  %v2175 = vmax.f32 %v1842, 0.0
  %v2176 = vmax.f32 %v1844, 0.0
  %v2177 = vmax.f32 %v1847, 0.0
  %v2178 = vmax.f32 %v1849, 0.0
  %v2179 = vmax.f32 %v1852, 0.0
  %v2180 = vmax.f32 %v1854, 0.0
  %v2181 = vmax.f32 %v1857, 0.0
  %v2182 = vmax.f32 %v1859, 0.0
  %v2183 = vmax.f32 %v1862, 0.0
  %v2184 = vmax.f32 %v1864, 0.0
  %v2185 = vmax.f32 %v1867, 0.0
  %v2186 = vmax.f32 %v1869, 0.0
  %v2187 = vmax.f32 %v1872, 0.0
  %v2188 = vmax.f32 %v1874, 0.0
  %v2189 = vmax.f32 %v1877, 0.0
  %v2190 = vmax.f32 %v1879, 0.0
  %v2191 = vmax.f32 %v1882, 0.0
  %v2192 = vmax.f32 %v1884, 0.0
  %v2193 = vmax.f32 %v1887, 0.0
  %v2194 = vmax.f32 %v1889, 0.0
  %v2195 = vmax.f32 %v1892, 0.0
  %v2196 = vmax.f32 %v1894, 0.0
  %v2197 = vmax.f32 %v1897, 0.0
  %v2198 = vmax.f32 %v1899, 0.0
  %v2199 = vmax.f32 %v1902, 0.0
  %v2200 = vmax.f32 %v1904, 0.0
  %v2201 = vmax.f32 %v1907, 0.0
  %v2202 = vmax.f32 %v1909, 0.0
  %v2203 = vmax.f32 %v1912, 0.0
  %v2204 = vmax.f32 %v1914, 0.0
  %v2205 = vmax.f32 %v1917, 0.0
  %v2206 = vmax.f32 %v1919, 0.0
  %v2207 = vmax.f32 %v1922, 0.0
  %v2208 = vmax.f32 %v1924, 0.0
  %v2209 = vmax.f32 %v1927, 0.0
  %v2210 = vmax.f32 %v1929, 0.0
  %v2211 = vmax.f32 %v1932, 0.0
  %v2212 = vmax.f32 %v1934, 0.0
  %v2213 = vmax.f32 %v1937, 0.0
  %v2214 = vmax.f32 %v1939, 0.0
  %v2215 = vmax.f32 %v1942, 0.0
  %v2216 = vmax.f32 %v1944, 0.0
  %v2217 = vmax.f32 %v1947, 0.0
  %v2218 = vmax.f32 %v1949, 0.0
  %v2219 = vmax.f32 %v1952, 0.0
  %v2220 = vmax.f32 %v1954, 0.0
  %v2221 = vmax.f32 %v1957, 0.0
  %v2222 = vmax.f32 %v1959, 0.0
  %v2223 = vmax.f32 %v1962, 0.0
  %v2224 = vmax.f32 %v1964, 0.0
  %v2225 = vmax.f32 %v1967, 0.0
  %v2226 = vmax.f32 %v1969, 0.0
  %v2227 = vpack.c.bf16 %v1971, %v1971
  %v2228 = vpack.c.bf16 %v1972, %v1972
  %v2229 = vpack.c.bf16 %v1973, %v1973
  %v2230 = vpack.c.bf16 %v1974, %v1974
  %v2231 = vpack.c.bf16 %v1975, %v1975
  %v2232 = vpack.c.bf16 %v1976, %v1976
  %v2233 = vpack.c.bf16 %v1977, %v1977
  %v2234 = vpack.c.bf16 %v1978, %v1978
  %v2235 = vpack.c.bf16 %v1979, %v1979
  %v2236 = vpack.c.bf16 %v1980, %v1980
  %v2237 = vpack.c.bf16 %v1981, %v1981
  %v2238 = vpack.c.bf16 %v1982, %v1982
  %v2239 = vpack.c.bf16 %v1983, %v1983
  %v2240 = vpack.c.bf16 %v1984, %v1984
  %v2241 = vpack.c.bf16 %v1985, %v1985
  %v2242 = vpack.c.bf16 %v1986, %v1986
  %v2243 = vpack.c.bf16 %v1987, %v1987
  %v2244 = vpack.c.bf16 %v1988, %v1988
  %v2245 = vpack.c.bf16 %v1989, %v1989
  %v2246 = vpack.c.bf16 %v1990, %v1990
  %v2247 = vpack.c.bf16 %v1991, %v1991
  %v2248 = vpack.c.bf16 %v1992, %v1992
  %v2249 = vpack.c.bf16 %v1993, %v1993
  %v2250 = vpack.c.bf16 %v1994, %v1994
  %v2251 = vpack.c.bf16 %v1995, %v1995
  %v2252 = vpack.c.bf16 %v1996, %v1996
  %v2253 = vpack.c.bf16 %v1997, %v1997
  %v2254 = vpack.c.bf16 %v1998, %v1998
  %v2255 = vpack.c.bf16 %v1999, %v1999
  %v2256 = vpack.c.bf16 %v2000, %v2000
  %v2257 = vpack.c.bf16 %v2001, %v2001
  %v2258 = vpack.c.bf16 %v2002, %v2002
  %v2259 = vpack.c.bf16 %v2003, %v2003
  %v2260 = vpack.c.bf16 %v2004, %v2004
  %v2261 = vpack.c.bf16 %v2005, %v2005
  %v2262 = vpack.c.bf16 %v2006, %v2006
  %v2263 = vpack.c.bf16 %v2007, %v2007
  %v2264 = vpack.c.bf16 %v2008, %v2008
  %v2265 = vpack.c.bf16 %v2009, %v2009
  %v2266 = vpack.c.bf16 %v2010, %v2010
  %v2267 = vpack.c.bf16 %v2011, %v2011
  %v2268 = vpack.c.bf16 %v2012, %v2012
  %v2269 = vpack.c.bf16 %v2013, %v2013
  %v2270 = vpack.c.bf16 %v2014, %v2014
  %v2271 = vpack.c.bf16 %v2015, %v2015
  %v2272 = vpack.c.bf16 %v2016, %v2016
  %v2273 = vpack.c.bf16 %v2017, %v2017
  %v2274 = vpack.c.bf16 %v2018, %v2018
  %v2275 = vpack.c.bf16 %v2019, %v2019
  %v2276 = vpack.c.bf16 %v2020, %v2020
  %v2277 = vpack.c.bf16 %v2021, %v2021
  %v2278 = vpack.c.bf16 %v2022, %v2022
  %v2279 = vpack.c.bf16 %v2023, %v2023
  %v2280 = vpack.c.bf16 %v2024, %v2024
  %v2281 = vpack.c.bf16 %v2025, %v2025
  %v2282 = vpack.c.bf16 %v2026, %v2026
  %v2283 = vpack.c.bf16 %v2027, %v2027
  %v2284 = vpack.c.bf16 %v2028, %v2028
  %v2285 = vpack.c.bf16 %v2029, %v2029
  %v2286 = vpack.c.bf16 %v2030, %v2030
  %v2287 = vpack.c.bf16 %v2031, %v2031
  %v2288 = vpack.c.bf16 %v2032, %v2032
  %v2289 = vpack.c.bf16 %v2033, %v2033
  %v2290 = vpack.c.bf16 %v2034, %v2034
  %v2291 = vpack.c.bf16 %v2035, %v2035
  %v2292 = vpack.c.bf16 %v2036, %v2036
  %v2293 = vpack.c.bf16 %v2037, %v2037
  %v2294 = vpack.c.bf16 %v2038, %v2038
  %v2295 = vpack.c.bf16 %v2039, %v2039
  %v2296 = vpack.c.bf16 %v2040, %v2040
  %v2297 = vpack.c.bf16 %v2041, %v2041
  %v2298 = vpack.c.bf16 %v2042, %v2042
  %v2299 = vpack.c.bf16 %v2043, %v2043
  %v2300 = vpack.c.bf16 %v2044, %v2044
  %v2301 = vpack.c.bf16 %v2045, %v2045
  %v2302 = vpack.c.bf16 %v2046, %v2046
  %v2303 = vpack.c.bf16 %v2047, %v2047
  %v2304 = vpack.c.bf16 %v2048, %v2048
  %v2305 = vpack.c.bf16 %v2049, %v2049
  %v2306 = vpack.c.bf16 %v2050, %v2050
  %v2307 = vpack.c.bf16 %v2051, %v2051
  %v2308 = vpack.c.bf16 %v2052, %v2052
  %v2309 = vpack.c.bf16 %v2053, %v2053
  %v2310 = vpack.c.bf16 %v2054, %v2054
  %v2311 = vpack.c.bf16 %v2055, %v2055
  %v2312 = vpack.c.bf16 %v2056, %v2056
  %v2313 = vpack.c.bf16 %v2057, %v2057
  %v2314 = vpack.c.bf16 %v2058, %v2058
  %v2315 = vpack.c.bf16 %v2059, %v2059
  %v2316 = vpack.c.bf16 %v2060, %v2060
  %v2317 = vpack.c.bf16 %v2061, %v2061
  %v2318 = vpack.c.bf16 %v2062, %v2062
  %v2319 = vpack.c.bf16 %v2063, %v2063
  %v2320 = vpack.c.bf16 %v2064, %v2064
  %v2321 = vpack.c.bf16 %v2065, %v2065
  %v2322 = vpack.c.bf16 %v2066, %v2066
  %v2323 = vpack.c.bf16 %v2067, %v2067
  %v2324 = vpack.c.bf16 %v2068, %v2068
  %v2325 = vpack.c.bf16 %v2069, %v2069
  %v2326 = vpack.c.bf16 %v2070, %v2070
  %v2327 = vpack.c.bf16 %v2071, %v2071
  %v2328 = vpack.c.bf16 %v2072, %v2072
  %v2329 = vpack.c.bf16 %v2073, %v2073
  %v2330 = vpack.c.bf16 %v2074, %v2074
  %v2331 = vpack.c.bf16 %v2075, %v2075
  %v2332 = vpack.c.bf16 %v2076, %v2076
  %v2333 = vpack.c.bf16 %v2077, %v2077
  %v2334 = vpack.c.bf16 %v2078, %v2078
  %v2335 = vpack.c.bf16 %v2079, %v2079
  %v2336 = vpack.c.bf16 %v2080, %v2080
  %v2337 = vpack.c.bf16 %v2081, %v2081
  %v2338 = vpack.c.bf16 %v2082, %v2082
  %v2339 = vpack.c.bf16 %v2083, %v2083
  %v2340 = vpack.c.bf16 %v2084, %v2084
  %v2341 = vpack.c.bf16 %v2085, %v2085
  %v2342 = vpack.c.bf16 %v2086, %v2086
  %v2343 = vpack.c.bf16 %v2087, %v2087
  %v2344 = vpack.c.bf16 %v2088, %v2088
  %v2345 = vpack.c.bf16 %v2089, %v2089
  %v2346 = vpack.c.bf16 %v2090, %v2090
  %v2347 = vpack.c.bf16 %v2091, %v2091
  %v2348 = vpack.c.bf16 %v2092, %v2092
  %v2349 = vpack.c.bf16 %v2093, %v2093
  %v2350 = vpack.c.bf16 %v2094, %v2094
  %v2351 = vpack.c.bf16 %v2095, %v2095
  %v2352 = vpack.c.bf16 %v2096, %v2096
  %v2353 = vpack.c.bf16 %v2097, %v2097
  %v2354 = vpack.c.bf16 %v2098, %v2098
  %v2355 = vpack.c.bf16 %v2099, %v2099
  %v2356 = vpack.c.bf16 %v2100, %v2100
  %v2357 = vpack.c.bf16 %v2101, %v2101
  %v2358 = vpack.c.bf16 %v2102, %v2102
  %v2359 = vpack.c.bf16 %v2103, %v2103
  %v2360 = vpack.c.bf16 %v2104, %v2104
  %v2361 = vpack.c.bf16 %v2105, %v2105
  %v2362 = vpack.c.bf16 %v2106, %v2106
  %v2363 = vpack.c.bf16 %v2107, %v2107
  %v2364 = vpack.c.bf16 %v2108, %v2108
  %v2365 = vpack.c.bf16 %v2109, %v2109
  %v2366 = vpack.c.bf16 %v2110, %v2110
  %v2367 = vpack.c.bf16 %v2111, %v2111
  %v2368 = vpack.c.bf16 %v2112, %v2112
  %v2369 = vpack.c.bf16 %v2113, %v2113
  %v2370 = vpack.c.bf16 %v2114, %v2114
  %v2371 = vpack.c.bf16 %v2115, %v2115
  %v2372 = vpack.c.bf16 %v2116, %v2116
  %v2373 = vpack.c.bf16 %v2117, %v2117
  %v2374 = vpack.c.bf16 %v2118, %v2118
  %v2375 = vpack.c.bf16 %v2119, %v2119
  %v2376 = vpack.c.bf16 %v2120, %v2120
  %v2377 = vpack.c.bf16 %v2121, %v2121
  %v2378 = vpack.c.bf16 %v2122, %v2122
  %v2379 = vpack.c.bf16 %v2123, %v2123
  %v2380 = vpack.c.bf16 %v2124, %v2124
  %v2381 = vpack.c.bf16 %v2125, %v2125
  %v2382 = vpack.c.bf16 %v2126, %v2126
  %v2383 = vpack.c.bf16 %v2127, %v2127
  %v2384 = vpack.c.bf16 %v2128, %v2128
  %v2385 = vpack.c.bf16 %v2129, %v2129
  %v2386 = vpack.c.bf16 %v2130, %v2130
  %v2387 = vpack.c.bf16 %v2131, %v2131
  %v2388 = vpack.c.bf16 %v2132, %v2132
  %v2389 = vpack.c.bf16 %v2133, %v2133
  %v2390 = vpack.c.bf16 %v2134, %v2134
  %v2391 = vpack.c.bf16 %v2135, %v2135
  %v2392 = vpack.c.bf16 %v2136, %v2136
  %v2393 = vpack.c.bf16 %v2137, %v2137
  %v2394 = vpack.c.bf16 %v2138, %v2138
  %v2395 = vpack.c.bf16 %v2139, %v2139
  %v2396 = vpack.c.bf16 %v2140, %v2140
  %v2397 = vpack.c.bf16 %v2141, %v2141
  %v2398 = vpack.c.bf16 %v2142, %v2142
  %v2399 = vpack.c.bf16 %v2143, %v2143
  %v2400 = vpack.c.bf16 %v2144, %v2144
  %v2401 = vpack.c.bf16 %v2145, %v2145
  %v2402 = vpack.c.bf16 %v2146, %v2146
  %v2403 = vpack.c.bf16 %v2147, %v2147
  %v2404 = vpack.c.bf16 %v2148, %v2148
  %v2405 = vpack.c.bf16 %v2149, %v2149
  %v2406 = vpack.c.bf16 %v2150, %v2150
  %v2407 = vpack.c.bf16 %v2151, %v2151
  %v2408 = vpack.c.bf16 %v2152, %v2152
  %v2409 = vpack.c.bf16 %v2153, %v2153
  %v2410 = vpack.c.bf16 %v2154, %v2154
  %v2411 = vpack.c.bf16 %v2155, %v2155
  %v2412 = vpack.c.bf16 %v2156, %v2156
  %v2413 = vpack.c.bf16 %v2157, %v2157
  %v2414 = vpack.c.bf16 %v2158, %v2158
  %v2415 = vpack.c.bf16 %v2159, %v2159
  %v2416 = vpack.c.bf16 %v2160, %v2160
  %v2417 = vpack.c.bf16 %v2161, %v2161
  %v2418 = vpack.c.bf16 %v2162, %v2162
  %v2419 = vpack.c.bf16 %v2163, %v2163
  %v2420 = vpack.c.bf16 %v2164, %v2164
  %v2421 = vpack.c.bf16 %v2165, %v2165
  %v2422 = vpack.c.bf16 %v2166, %v2166
  %v2423 = vpack.c.bf16 %v2167, %v2167
  %v2424 = vpack.c.bf16 %v2168, %v2168
  %v2425 = vpack.c.bf16 %v2169, %v2169
  %v2426 = vpack.c.bf16 %v2170, %v2170
  %v2427 = vpack.c.bf16 %v2171, %v2171
  %v2428 = vpack.c.bf16 %v2172, %v2172
  %v2429 = vpack.c.bf16 %v2173, %v2173
  %v2430 = vpack.c.bf16 %v2174, %v2174
  %v2431 = vpack.c.bf16 %v2175, %v2175
  %v2432 = vpack.c.bf16 %v2176, %v2176
  %v2433 = vpack.c.bf16 %v2177, %v2177
  %v2434 = vpack.c.bf16 %v2178, %v2178
  %v2435 = vpack.c.bf16 %v2179, %v2179
  %v2436 = vpack.c.bf16 %v2180, %v2180
  %v2437 = vpack.c.bf16 %v2181, %v2181
  %v2438 = vpack.c.bf16 %v2182, %v2182
  %v2439 = vpack.c.bf16 %v2183, %v2183
  %v2440 = vpack.c.bf16 %v2184, %v2184
  %v2441 = vpack.c.bf16 %v2185, %v2185
  %v2442 = vpack.c.bf16 %v2186, %v2186
  %v2443 = vpack.c.bf16 %v2187, %v2187
  %v2444 = vpack.c.bf16 %v2188, %v2188
  %v2445 = vpack.c.bf16 %v2189, %v2189
  %v2446 = vpack.c.bf16 %v2190, %v2190
  %v2447 = vpack.c.bf16 %v2191, %v2191
  %v2448 = vpack.c.bf16 %v2192, %v2192
  %v2449 = vpack.c.bf16 %v2193, %v2193
  %v2450 = vpack.c.bf16 %v2194, %v2194
  %v2451 = vpack.c.bf16 %v2195, %v2195
  %v2452 = vpack.c.bf16 %v2196, %v2196
  %v2453 = vpack.c.bf16 %v2197, %v2197
  %v2454 = vpack.c.bf16 %v2198, %v2198
  %v2455 = vpack.c.bf16 %v2199, %v2199
  %v2456 = vpack.c.bf16 %v2200, %v2200
  %v2457 = vpack.c.bf16 %v2201, %v2201
  %v2458 = vpack.c.bf16 %v2202, %v2202
  %v2459 = vpack.c.bf16 %v2203, %v2203
  %v2460 = vpack.c.bf16 %v2204, %v2204
  %v2461 = vpack.c.bf16 %v2205, %v2205
  %v2462 = vpack.c.bf16 %v2206, %v2206
  %v2463 = vpack.c.bf16 %v2207, %v2207
  %v2464 = vpack.c.bf16 %v2208, %v2208
  %v2465 = vpack.c.bf16 %v2209, %v2209
  %v2466 = vpack.c.bf16 %v2210, %v2210
  %v2467 = vpack.c.bf16 %v2211, %v2211
  %v2468 = vpack.c.bf16 %v2212, %v2212
  %v2469 = vpack.c.bf16 %v2213, %v2213
  %v2470 = vpack.c.bf16 %v2214, %v2214
  %v2471 = vpack.c.bf16 %v2215, %v2215
  %v2472 = vpack.c.bf16 %v2216, %v2216
  %v2473 = vpack.c.bf16 %v2217, %v2217
  %v2474 = vpack.c.bf16 %v2218, %v2218
  %v2475 = vpack.c.bf16 %v2219, %v2219
  %v2476 = vpack.c.bf16 %v2220, %v2220
  %v2477 = vpack.c.bf16 %v2221, %v2221
  %v2478 = vpack.c.bf16 %v2222, %v2222
  %v2479 = vpack.c.bf16 %v2223, %v2223
  %v2480 = vpack.c.bf16 %v2224, %v2224
  %v2481 = vpack.c.bf16 %v2225, %v2225
  %v2482 = vpack.c.bf16 %v2226, %v2226
  %vm2483 = vcmask 519168
  %2484 = vst.msk [vmem:[%s3] sm:$0xf] %vm2483, %v2227
  %2485 = vst.msk [vmem:[%s3 + $0x4] sm:$0xf] %vm2483, %v2228
  %2486 = vst.msk [vmem:[%s3 + $0x8] sm:$0xf] %vm2483, %v2229
  %2487 = vst.msk [vmem:[%s3 + $0xc] sm:$0xf] %vm2483, %v2230
  %2488 = vst.msk [vmem:[%s3 + $0x10] sm:$0xf] %vm2483, %v2231
  %2489 = vst.msk [vmem:[%s3 + $0x14] sm:$0xf] %vm2483, %v2232
  %2490 = vst.msk [vmem:[%s3 + $0x18] sm:$0xf] %vm2483, %v2233
  %2491 = vst.msk [vmem:[%s3 + $0x1c] sm:$0xf] %vm2483, %v2234
  %2492 = vst.msk [vmem:[%s3 + $0x20] sm:$0xf] %vm2483, %v2235
  %2493 = vst.msk [vmem:[%s3 + $0x24] sm:$0xf] %vm2483, %v2236
  %2494 = vst.msk [vmem:[%s3 + $0x28] sm:$0xf] %vm2483, %v2237
  %2495 = vst.msk [vmem:[%s3 + $0x2c] sm:$0xf] %vm2483, %v2238
  %2496 = vst.msk [vmem:[%s3 + $0x30] sm:$0xf] %vm2483, %v2239
  %2497 = vst.msk [vmem:[%s3 + $0x34] sm:$0xf] %vm2483, %v2240
  %2498 = vst.msk [vmem:[%s3 + $0x38] sm:$0xf] %vm2483, %v2241
  %2499 = vst.msk [vmem:[%s3 + $0x3c] sm:$0xf] %vm2483, %v2242
  %2500 = vst.msk [vmem:[%s3 + $0x40] sm:$0xf] %vm2483, %v2243
  %2501 = vst.msk [vmem:[%s3 + $0x44] sm:$0xf] %vm2483, %v2244
  %2502 = vst.msk [vmem:[%s3 + $0x48] sm:$0xf] %vm2483, %v2245
  %2503 = vst.msk [vmem:[%s3 + $0x4c] sm:$0xf] %vm2483, %v2246
  %2504 = vst.msk [vmem:[%s3 + $0x50] sm:$0xf] %vm2483, %v2247
  %2505 = vst.msk [vmem:[%s3 + $0x54] sm:$0xf] %vm2483, %v2248
  %2506 = vst.msk [vmem:[%s3 + $0x58] sm:$0xf] %vm2483, %v2249
  %2507 = vst.msk [vmem:[%s3 + $0x5c] sm:$0xf] %vm2483, %v2250
  %2508 = vst.msk [vmem:[%s3 + $0x60] sm:$0xf] %vm2483, %v2251
  %2509 = vst.msk [vmem:[%s3 + $0x64] sm:$0xf] %vm2483, %v2252
  %2510 = vst.msk [vmem:[%s3 + $0x68] sm:$0xf] %vm2483, %v2253
  %2511 = vst.msk [vmem:[%s3 + $0x6c] sm:$0xf] %vm2483, %v2254
  %2512 = vst.msk [vmem:[%s3 + $0x70] sm:$0xf] %vm2483, %v2255
  %2513 = vst.msk [vmem:[%s3 + $0x74] sm:$0xf] %vm2483, %v2256
  %2514 = vst.msk [vmem:[%s3 + $0x78] sm:$0xf] %vm2483, %v2257
  %2515 = vst.msk [vmem:[%s3 + $0x7c] sm:$0xf] %vm2483, %v2258
  %2516 = vst.msk [vmem:[%s3 + $0x80] sm:$0xf] %vm2483, %v2259
  %2517 = vst.msk [vmem:[%s3 + $0x84] sm:$0xf] %vm2483, %v2260
  %2518 = vst.msk [vmem:[%s3 + $0x88] sm:$0xf] %vm2483, %v2261
  %2519 = vst.msk [vmem:[%s3 + $0x8c] sm:$0xf] %vm2483, %v2262
  %2520 = vst.msk [vmem:[%s3 + $0x90] sm:$0xf] %vm2483, %v2263
  %2521 = vst.msk [vmem:[%s3 + $0x94] sm:$0xf] %vm2483, %v2264
  %2522 = vst.msk [vmem:[%s3 + $0x98] sm:$0xf] %vm2483, %v2265
  %2523 = vst.msk [vmem:[%s3 + $0x9c] sm:$0xf] %vm2483, %v2266
  %2524 = vst.msk [vmem:[%s3 + $0xa0] sm:$0xf] %vm2483, %v2267
  %2525 = vst.msk [vmem:[%s3 + $0xa4] sm:$0xf] %vm2483, %v2268
  %2526 = vst.msk [vmem:[%s3 + $0xa8] sm:$0xf] %vm2483, %v2269
  %2527 = vst.msk [vmem:[%s3 + $0xac] sm:$0xf] %vm2483, %v2270
  %2528 = vst.msk [vmem:[%s3 + $0xb0] sm:$0xf] %vm2483, %v2271
  %2529 = vst.msk [vmem:[%s3 + $0xb4] sm:$0xf] %vm2483, %v2272
  %2530 = vst.msk [vmem:[%s3 + $0xb8] sm:$0xf] %vm2483, %v2273
  %2531 = vst.msk [vmem:[%s3 + $0xbc] sm:$0xf] %vm2483, %v2274
  %2532 = vst.msk [vmem:[%s3 + $0xc0] sm:$0xf] %vm2483, %v2275
  %2533 = vst.msk [vmem:[%s3 + $0xc4] sm:$0xf] %vm2483, %v2276
  %2534 = vst.msk [vmem:[%s3 + $0xc8] sm:$0xf] %vm2483, %v2277
  %2535 = vst.msk [vmem:[%s3 + $0xcc] sm:$0xf] %vm2483, %v2278
  %2536 = vst.msk [vmem:[%s3 + $0xd0] sm:$0xf] %vm2483, %v2279
  %2537 = vst.msk [vmem:[%s3 + $0xd4] sm:$0xf] %vm2483, %v2280
  %2538 = vst.msk [vmem:[%s3 + $0xd8] sm:$0xf] %vm2483, %v2281
  %2539 = vst.msk [vmem:[%s3 + $0xdc] sm:$0xf] %vm2483, %v2282
  %2540 = vst.msk [vmem:[%s3 + $0xe0] sm:$0xf] %vm2483, %v2283
  %2541 = vst.msk [vmem:[%s3 + $0xe4] sm:$0xf] %vm2483, %v2284
  %2542 = vst.msk [vmem:[%s3 + $0xe8] sm:$0xf] %vm2483, %v2285
  %2543 = vst.msk [vmem:[%s3 + $0xec] sm:$0xf] %vm2483, %v2286
  %2544 = vst.msk [vmem:[%s3 + $0xf0] sm:$0xf] %vm2483, %v2287
  %2545 = vst.msk [vmem:[%s3 + $0xf4] sm:$0xf] %vm2483, %v2288
  %2546 = vst.msk [vmem:[%s3 + $0xf8] sm:$0xf] %vm2483, %v2289
  %2547 = vst.msk [vmem:[%s3 + $0xfc] sm:$0xf] %vm2483, %v2290
  %2548 = vst.msk [vmem:[%s3 + $0x100] sm:$0xf] %vm2483, %v2291
  %2549 = vst.msk [vmem:[%s3 + $0x104] sm:$0xf] %vm2483, %v2292
  %2550 = vst.msk [vmem:[%s3 + $0x108] sm:$0xf] %vm2483, %v2293
  %2551 = vst.msk [vmem:[%s3 + $0x10c] sm:$0xf] %vm2483, %v2294
  %2552 = vst.msk [vmem:[%s3 + $0x110] sm:$0xf] %vm2483, %v2295
  %2553 = vst.msk [vmem:[%s3 + $0x114] sm:$0xf] %vm2483, %v2296
  %2554 = vst.msk [vmem:[%s3 + $0x118] sm:$0xf] %vm2483, %v2297
  %2555 = vst.msk [vmem:[%s3 + $0x11c] sm:$0xf] %vm2483, %v2298
  %2556 = vst.msk [vmem:[%s3 + $0x120] sm:$0xf] %vm2483, %v2299
  %2557 = vst.msk [vmem:[%s3 + $0x124] sm:$0xf] %vm2483, %v2300
  %2558 = vst.msk [vmem:[%s3 + $0x128] sm:$0xf] %vm2483, %v2301
  %2559 = vst.msk [vmem:[%s3 + $0x12c] sm:$0xf] %vm2483, %v2302
  %2560 = vst.msk [vmem:[%s3 + $0x130] sm:$0xf] %vm2483, %v2303
  %2561 = vst.msk [vmem:[%s3 + $0x134] sm:$0xf] %vm2483, %v2304
  %2562 = vst.msk [vmem:[%s3 + $0x138] sm:$0xf] %vm2483, %v2305
  %2563 = vst.msk [vmem:[%s3 + $0x13c] sm:$0xf] %vm2483, %v2306
  %2564 = vst.msk [vmem:[%s3 + $0x140] sm:$0xf] %vm2483, %v2307
  %2565 = vst.msk [vmem:[%s3 + $0x144] sm:$0xf] %vm2483, %v2308
  %2566 = vst.msk [vmem:[%s3 + $0x148] sm:$0xf] %vm2483, %v2309
  %2567 = vst.msk [vmem:[%s3 + $0x14c] sm:$0xf] %vm2483, %v2310
  %2568 = vst.msk [vmem:[%s3 + $0x150] sm:$0xf] %vm2483, %v2311
  %2569 = vst.msk [vmem:[%s3 + $0x154] sm:$0xf] %vm2483, %v2312
  %2570 = vst.msk [vmem:[%s3 + $0x158] sm:$0xf] %vm2483, %v2313
  %2571 = vst.msk [vmem:[%s3 + $0x15c] sm:$0xf] %vm2483, %v2314
  %2572 = vst.msk [vmem:[%s3 + $0x160] sm:$0xf] %vm2483, %v2315
  %2573 = vst.msk [vmem:[%s3 + $0x164] sm:$0xf] %vm2483, %v2316
  %2574 = vst.msk [vmem:[%s3 + $0x168] sm:$0xf] %vm2483, %v2317
  %2575 = vst.msk [vmem:[%s3 + $0x16c] sm:$0xf] %vm2483, %v2318
  %2576 = vst.msk [vmem:[%s3 + $0x170] sm:$0xf] %vm2483, %v2319
  %2577 = vst.msk [vmem:[%s3 + $0x174] sm:$0xf] %vm2483, %v2320
  %2578 = vst.msk [vmem:[%s3 + $0x178] sm:$0xf] %vm2483, %v2321
  %2579 = vst.msk [vmem:[%s3 + $0x17c] sm:$0xf] %vm2483, %v2322
  %2580 = vst.msk [vmem:[%s3 + $0x180] sm:$0xf] %vm2483, %v2323
  %2581 = vst.msk [vmem:[%s3 + $0x184] sm:$0xf] %vm2483, %v2324
  %2582 = vst.msk [vmem:[%s3 + $0x188] sm:$0xf] %vm2483, %v2325
  %2583 = vst.msk [vmem:[%s3 + $0x18c] sm:$0xf] %vm2483, %v2326
  %2584 = vst.msk [vmem:[%s3 + $0x190] sm:$0xf] %vm2483, %v2327
  %2585 = vst.msk [vmem:[%s3 + $0x194] sm:$0xf] %vm2483, %v2328
  %2586 = vst.msk [vmem:[%s3 + $0x198] sm:$0xf] %vm2483, %v2329
  %2587 = vst.msk [vmem:[%s3 + $0x19c] sm:$0xf] %vm2483, %v2330
  %2588 = vst.msk [vmem:[%s3 + $0x1a0] sm:$0xf] %vm2483, %v2331
  %2589 = vst.msk [vmem:[%s3 + $0x1a4] sm:$0xf] %vm2483, %v2332
  %2590 = vst.msk [vmem:[%s3 + $0x1a8] sm:$0xf] %vm2483, %v2333
  %2591 = vst.msk [vmem:[%s3 + $0x1ac] sm:$0xf] %vm2483, %v2334
  %2592 = vst.msk [vmem:[%s3 + $0x1b0] sm:$0xf] %vm2483, %v2335
  %2593 = vst.msk [vmem:[%s3 + $0x1b4] sm:$0xf] %vm2483, %v2336
  %2594 = vst.msk [vmem:[%s3 + $0x1b8] sm:$0xf] %vm2483, %v2337
  %2595 = vst.msk [vmem:[%s3 + $0x1bc] sm:$0xf] %vm2483, %v2338
  %2596 = vst.msk [vmem:[%s3 + $0x1c0] sm:$0xf] %vm2483, %v2339
  %2597 = vst.msk [vmem:[%s3 + $0x1c4] sm:$0xf] %vm2483, %v2340
  %2598 = vst.msk [vmem:[%s3 + $0x1c8] sm:$0xf] %vm2483, %v2341
  %2599 = vst.msk [vmem:[%s3 + $0x1cc] sm:$0xf] %vm2483, %v2342
  %2600 = vst.msk [vmem:[%s3 + $0x1d0] sm:$0xf] %vm2483, %v2343
  %2601 = vst.msk [vmem:[%s3 + $0x1d4] sm:$0xf] %vm2483, %v2344
  %2602 = vst.msk [vmem:[%s3 + $0x1d8] sm:$0xf] %vm2483, %v2345
  %2603 = vst.msk [vmem:[%s3 + $0x1dc] sm:$0xf] %vm2483, %v2346
  %2604 = vst.msk [vmem:[%s3 + $0x1e0] sm:$0xf] %vm2483, %v2347
  %2605 = vst.msk [vmem:[%s3 + $0x1e4] sm:$0xf] %vm2483, %v2348
  %2606 = vst.msk [vmem:[%s3 + $0x1e8] sm:$0xf] %vm2483, %v2349
  %2607 = vst.msk [vmem:[%s3 + $0x1ec] sm:$0xf] %vm2483, %v2350
  %2608 = vst.msk [vmem:[%s3 + $0x1f0] sm:$0xf] %vm2483, %v2351
  %2609 = vst.msk [vmem:[%s3 + $0x1f4] sm:$0xf] %vm2483, %v2352
  %2610 = vst.msk [vmem:[%s3 + $0x1f8] sm:$0xf] %vm2483, %v2353
  %2611 = vst.msk [vmem:[%s3 + $0x1fc] sm:$0xf] %vm2483, %v2354
  %2612 = vst.msk [vmem:[%s3 + $0x200] sm:$0xf] %vm2483, %v2355
  %2613 = vst.msk [vmem:[%s3 + $0x204] sm:$0xf] %vm2483, %v2356
  %2614 = vst.msk [vmem:[%s3 + $0x208] sm:$0xf] %vm2483, %v2357
  %2615 = vst.msk [vmem:[%s3 + $0x20c] sm:$0xf] %vm2483, %v2358
  %2616 = vst.msk [vmem:[%s3 + $0x210] sm:$0xf] %vm2483, %v2359
  %2617 = vst.msk [vmem:[%s3 + $0x214] sm:$0xf] %vm2483, %v2360
  %2618 = vst.msk [vmem:[%s3 + $0x218] sm:$0xf] %vm2483, %v2361
  %2619 = vst.msk [vmem:[%s3 + $0x21c] sm:$0xf] %vm2483, %v2362
  %2620 = vst.msk [vmem:[%s3 + $0x220] sm:$0xf] %vm2483, %v2363
  %2621 = vst.msk [vmem:[%s3 + $0x224] sm:$0xf] %vm2483, %v2364
  %2622 = vst.msk [vmem:[%s3 + $0x228] sm:$0xf] %vm2483, %v2365
  %2623 = vst.msk [vmem:[%s3 + $0x22c] sm:$0xf] %vm2483, %v2366
  %2624 = vst.msk [vmem:[%s3 + $0x230] sm:$0xf] %vm2483, %v2367
  %2625 = vst.msk [vmem:[%s3 + $0x234] sm:$0xf] %vm2483, %v2368
  %2626 = vst.msk [vmem:[%s3 + $0x238] sm:$0xf] %vm2483, %v2369
  %2627 = vst.msk [vmem:[%s3 + $0x23c] sm:$0xf] %vm2483, %v2370
  %2628 = vst.msk [vmem:[%s3 + $0x240] sm:$0xf] %vm2483, %v2371
  %2629 = vst.msk [vmem:[%s3 + $0x244] sm:$0xf] %vm2483, %v2372
  %2630 = vst.msk [vmem:[%s3 + $0x248] sm:$0xf] %vm2483, %v2373
  %2631 = vst.msk [vmem:[%s3 + $0x24c] sm:$0xf] %vm2483, %v2374
  %2632 = vst.msk [vmem:[%s3 + $0x250] sm:$0xf] %vm2483, %v2375
  %2633 = vst.msk [vmem:[%s3 + $0x254] sm:$0xf] %vm2483, %v2376
  %2634 = vst.msk [vmem:[%s3 + $0x258] sm:$0xf] %vm2483, %v2377
  %2635 = vst.msk [vmem:[%s3 + $0x25c] sm:$0xf] %vm2483, %v2378
  %2636 = vst.msk [vmem:[%s3 + $0x260] sm:$0xf] %vm2483, %v2379
  %2637 = vst.msk [vmem:[%s3 + $0x264] sm:$0xf] %vm2483, %v2380
  %2638 = vst.msk [vmem:[%s3 + $0x268] sm:$0xf] %vm2483, %v2381
  %2639 = vst.msk [vmem:[%s3 + $0x26c] sm:$0xf] %vm2483, %v2382
  %2640 = vst.msk [vmem:[%s3 + $0x270] sm:$0xf] %vm2483, %v2383
  %2641 = vst.msk [vmem:[%s3 + $0x274] sm:$0xf] %vm2483, %v2384
  %2642 = vst.msk [vmem:[%s3 + $0x278] sm:$0xf] %vm2483, %v2385
  %2643 = vst.msk [vmem:[%s3 + $0x27c] sm:$0xf] %vm2483, %v2386
  %2644 = vst.msk [vmem:[%s3 + $0x280] sm:$0xf] %vm2483, %v2387
  %2645 = vst.msk [vmem:[%s3 + $0x284] sm:$0xf] %vm2483, %v2388
  %2646 = vst.msk [vmem:[%s3 + $0x288] sm:$0xf] %vm2483, %v2389
  %2647 = vst.msk [vmem:[%s3 + $0x28c] sm:$0xf] %vm2483, %v2390
  %2648 = vst.msk [vmem:[%s3 + $0x290] sm:$0xf] %vm2483, %v2391
  %2649 = vst.msk [vmem:[%s3 + $0x294] sm:$0xf] %vm2483, %v2392
  %2650 = vst.msk [vmem:[%s3 + $0x298] sm:$0xf] %vm2483, %v2393
  %2651 = vst.msk [vmem:[%s3 + $0x29c] sm:$0xf] %vm2483, %v2394
  %2652 = vst.msk [vmem:[%s3 + $0x2a0] sm:$0xf] %vm2483, %v2395
  %2653 = vst.msk [vmem:[%s3 + $0x2a4] sm:$0xf] %vm2483, %v2396
  %2654 = vst.msk [vmem:[%s3 + $0x2a8] sm:$0xf] %vm2483, %v2397
  %2655 = vst.msk [vmem:[%s3 + $0x2ac] sm:$0xf] %vm2483, %v2398
  %2656 = vst.msk [vmem:[%s3 + $0x2b0] sm:$0xf] %vm2483, %v2399
  %2657 = vst.msk [vmem:[%s3 + $0x2b4] sm:$0xf] %vm2483, %v2400
  %2658 = vst.msk [vmem:[%s3 + $0x2b8] sm:$0xf] %vm2483, %v2401
  %2659 = vst.msk [vmem:[%s3 + $0x2bc] sm:$0xf] %vm2483, %v2402
  %2660 = vst.msk [vmem:[%s3 + $0x2c0] sm:$0xf] %vm2483, %v2403
  %2661 = vst.msk [vmem:[%s3 + $0x2c4] sm:$0xf] %vm2483, %v2404
  %2662 = vst.msk [vmem:[%s3 + $0x2c8] sm:$0xf] %vm2483, %v2405
  %2663 = vst.msk [vmem:[%s3 + $0x2cc] sm:$0xf] %vm2483, %v2406
  %2664 = vst.msk [vmem:[%s3 + $0x2d0] sm:$0xf] %vm2483, %v2407
  %2665 = vst.msk [vmem:[%s3 + $0x2d4] sm:$0xf] %vm2483, %v2408
  %2666 = vst.msk [vmem:[%s3 + $0x2d8] sm:$0xf] %vm2483, %v2409
  %2667 = vst.msk [vmem:[%s3 + $0x2dc] sm:$0xf] %vm2483, %v2410
  %2668 = vst.msk [vmem:[%s3 + $0x2e0] sm:$0xf] %vm2483, %v2411
  %2669 = vst.msk [vmem:[%s3 + $0x2e4] sm:$0xf] %vm2483, %v2412
  %2670 = vst.msk [vmem:[%s3 + $0x2e8] sm:$0xf] %vm2483, %v2413
  %2671 = vst.msk [vmem:[%s3 + $0x2ec] sm:$0xf] %vm2483, %v2414
  %2672 = vst.msk [vmem:[%s3 + $0x2f0] sm:$0xf] %vm2483, %v2415
  %2673 = vst.msk [vmem:[%s3 + $0x2f4] sm:$0xf] %vm2483, %v2416
  %2674 = vst.msk [vmem:[%s3 + $0x2f8] sm:$0xf] %vm2483, %v2417
  %2675 = vst.msk [vmem:[%s3 + $0x2fc] sm:$0xf] %vm2483, %v2418
  %2676 = vst.msk [vmem:[%s3 + $0x300] sm:$0xf] %vm2483, %v2419
  %2677 = vst.msk [vmem:[%s3 + $0x304] sm:$0xf] %vm2483, %v2420
  %2678 = vst.msk [vmem:[%s3 + $0x308] sm:$0xf] %vm2483, %v2421
  %2679 = vst.msk [vmem:[%s3 + $0x30c] sm:$0xf] %vm2483, %v2422
  %2680 = vst.msk [vmem:[%s3 + $0x310] sm:$0xf] %vm2483, %v2423
  %2681 = vst.msk [vmem:[%s3 + $0x314] sm:$0xf] %vm2483, %v2424
  %2682 = vst.msk [vmem:[%s3 + $0x318] sm:$0xf] %vm2483, %v2425
  %2683 = vst.msk [vmem:[%s3 + $0x31c] sm:$0xf] %vm2483, %v2426
  %2684 = vst.msk [vmem:[%s3 + $0x320] sm:$0xf] %vm2483, %v2427
  %2685 = vst.msk [vmem:[%s3 + $0x324] sm:$0xf] %vm2483, %v2428
  %2686 = vst.msk [vmem:[%s3 + $0x328] sm:$0xf] %vm2483, %v2429
  %2687 = vst.msk [vmem:[%s3 + $0x32c] sm:$0xf] %vm2483, %v2430
  %2688 = vst.msk [vmem:[%s3 + $0x330] sm:$0xf] %vm2483, %v2431
  %2689 = vst.msk [vmem:[%s3 + $0x334] sm:$0xf] %vm2483, %v2432
  %2690 = vst.msk [vmem:[%s3 + $0x338] sm:$0xf] %vm2483, %v2433
  %2691 = vst.msk [vmem:[%s3 + $0x33c] sm:$0xf] %vm2483, %v2434
  %2692 = vst.msk [vmem:[%s3 + $0x340] sm:$0xf] %vm2483, %v2435
  %2693 = vst.msk [vmem:[%s3 + $0x344] sm:$0xf] %vm2483, %v2436
  %2694 = vst.msk [vmem:[%s3 + $0x348] sm:$0xf] %vm2483, %v2437
  %2695 = vst.msk [vmem:[%s3 + $0x34c] sm:$0xf] %vm2483, %v2438
  %2696 = vst.msk [vmem:[%s3 + $0x350] sm:$0xf] %vm2483, %v2439
  %2697 = vst.msk [vmem:[%s3 + $0x354] sm:$0xf] %vm2483, %v2440
  %2698 = vst.msk [vmem:[%s3 + $0x358] sm:$0xf] %vm2483, %v2441
  %2699 = vst.msk [vmem:[%s3 + $0x35c] sm:$0xf] %vm2483, %v2442
  %2700 = vst.msk [vmem:[%s3 + $0x360] sm:$0xf] %vm2483, %v2443
  %2701 = vst.msk [vmem:[%s3 + $0x364] sm:$0xf] %vm2483, %v2444
  %2702 = vst.msk [vmem:[%s3 + $0x368] sm:$0xf] %vm2483, %v2445
  %2703 = vst.msk [vmem:[%s3 + $0x36c] sm:$0xf] %vm2483, %v2446
  %2704 = vst.msk [vmem:[%s3 + $0x370] sm:$0xf] %vm2483, %v2447
  %2705 = vst.msk [vmem:[%s3 + $0x374] sm:$0xf] %vm2483, %v2448
  %2706 = vst.msk [vmem:[%s3 + $0x378] sm:$0xf] %vm2483, %v2449
  %2707 = vst.msk [vmem:[%s3 + $0x37c] sm:$0xf] %vm2483, %v2450
  %2708 = vst.msk [vmem:[%s3 + $0x380] sm:$0xf] %vm2483, %v2451
  %2709 = vst.msk [vmem:[%s3 + $0x384] sm:$0xf] %vm2483, %v2452
  %2710 = vst.msk [vmem:[%s3 + $0x388] sm:$0xf] %vm2483, %v2453
  %2711 = vst.msk [vmem:[%s3 + $0x38c] sm:$0xf] %vm2483, %v2454
  %2712 = vst.msk [vmem:[%s3 + $0x390] sm:$0xf] %vm2483, %v2455
  %2713 = vst.msk [vmem:[%s3 + $0x394] sm:$0xf] %vm2483, %v2456
  %2714 = vst.msk [vmem:[%s3 + $0x398] sm:$0xf] %vm2483, %v2457
  %2715 = vst.msk [vmem:[%s3 + $0x39c] sm:$0xf] %vm2483, %v2458
  %2716 = vst.msk [vmem:[%s3 + $0x3a0] sm:$0xf] %vm2483, %v2459
  %2717 = vst.msk [vmem:[%s3 + $0x3a4] sm:$0xf] %vm2483, %v2460
  %2718 = vst.msk [vmem:[%s3 + $0x3a8] sm:$0xf] %vm2483, %v2461
  %2719 = vst.msk [vmem:[%s3 + $0x3ac] sm:$0xf] %vm2483, %v2462
  %2720 = vst.msk [vmem:[%s3 + $0x3b0] sm:$0xf] %vm2483, %v2463
  %2721 = vst.msk [vmem:[%s3 + $0x3b4] sm:$0xf] %vm2483, %v2464
  %2722 = vst.msk [vmem:[%s3 + $0x3b8] sm:$0xf] %vm2483, %v2465
  %2723 = vst.msk [vmem:[%s3 + $0x3bc] sm:$0xf] %vm2483, %v2466
  %2724 = vst.msk [vmem:[%s3 + $0x3c0] sm:$0xf] %vm2483, %v2467
  %2725 = vst.msk [vmem:[%s3 + $0x3c4] sm:$0xf] %vm2483, %v2468
  %2726 = vst.msk [vmem:[%s3 + $0x3c8] sm:$0xf] %vm2483, %v2469
  %2727 = vst.msk [vmem:[%s3 + $0x3cc] sm:$0xf] %vm2483, %v2470
  %2728 = vst.msk [vmem:[%s3 + $0x3d0] sm:$0xf] %vm2483, %v2471
  %2729 = vst.msk [vmem:[%s3 + $0x3d4] sm:$0xf] %vm2483, %v2472
  %2730 = vst.msk [vmem:[%s3 + $0x3d8] sm:$0xf] %vm2483, %v2473
  %2731 = vst.msk [vmem:[%s3 + $0x3dc] sm:$0xf] %vm2483, %v2474
  %2732 = vst.msk [vmem:[%s3 + $0x3e0] sm:$0xf] %vm2483, %v2475
  %2733 = vst.msk [vmem:[%s3 + $0x3e4] sm:$0xf] %vm2483, %v2476
  %2734 = vst.msk [vmem:[%s3 + $0x3e8] sm:$0xf] %vm2483, %v2477
  %2735 = vst.msk [vmem:[%s3 + $0x3ec] sm:$0xf] %vm2483, %v2478
  %2736 = vst.msk [vmem:[%s3 + $0x3f0] sm:$0xf] %vm2483, %v2479
  %2737 = vst.msk [vmem:[%s3 + $0x3f4] sm:$0xf] %vm2483, %v2480
  %2738 = vst.msk [vmem:[%s3 + $0x3f8] sm:$0xf] %vm2483, %v2481
  %2739 = vst.msk [vmem:[%s3 + $0x3fc] sm:$0xf] %vm2483, %v2482
  // Predicated region
  $region14: #{tpu_custom_call.1} parent=0 // pred_check
    _
  $region15: #{tpu_custom_call.1} parent=0 // pred_check_branch
    %2741 = sbr.rel (0) target = $region17
  $region16: #{tpu_custom_call.1} parent=0 // pred_region
    _
  $region17: #{tpu_custom_call.1} parent=0 // pred_fallthru
    _
  // Predicated region
  $region18: #{tpu_custom_call.1} parent=0 // pred_check
    _
  $region19: #{tpu_custom_call.1} parent=0 // pred_check_branch
    %2743 = sbr.rel (0) target = $region21
  $region20: #{tpu_custom_call.1} parent=0 // pred_region
    _
  $region21: #{tpu_custom_call.1} parent=0 // pred_fallthru
    _

</llo_original>
